<compile_context>
chip_gen: v6e
topology: v6e:2x2x1
jax: 0.10.0
libtpu: 0.0.40
codegen_flags: <defaults>
</compile_context>

<pallas_src>
import jax
import jax.numpy as jnp
from jax.experimental import pallas as pl
from jax.experimental.pallas import tpu as pltpu

_LANE = 128   # TPU lane width.  NOTE: if feat/logit dims grow to >=256, pad to
_SUB = 8      # 256 on v6e/v7x (2x256^2 MXU); 128 already matches v5e's 4x128^2.


def _round_up(x, m):
    return ((x + m - 1) // m) * m


def _pad2d(x, rows, cols):
    return jnp.pad(x, ((0, rows - x.shape[0]), (0, cols - x.shape[1])))


# ---------------------------------------------------------------------------
# Fused Pallas kernel: box MLP + union MLP + in-kernel pair gather + predictor
# ---------------------------------------------------------------------------
def _fused_sgg_kernel(pooled_ref, upooled_ref, idx_ref,
                      w_in_ref, w_sq_ref, bias_ref,
                      roi_ref, refine_ref, rel_ref,
                      roi_sc):
    """One grid step = one relation-row tile.  Step 0 additionally runs the box
    feature extractor + object-refinement head and parks roi (bf16) in scratch.

    Weight stacks:
      w_in_ref = [W1_box, W1_union]                              (2, K_PAD, 128) bf16
      w_sq_ref = [W2_box, W2_union, W_obj, W_ps, W_po, W_rel]    (6, 128, 128)   bf16
      bias_ref = [b1, b2, bu1, bu2, bobj, bp, brel, 0]           (8, 128)        f32
    """
    f32, bf16 = jnp.float32, jnp.bfloat16

    def mm(a, b):                                  # bf16 x bf16 -> f32 accumulate (MXU)
        return jnp.dot(a.astype(bf16), b, preferred_element_type=f32)

    b1, b2 = bias_ref[0:1, :], bias_ref[1:2, :]
    bu1, bu2 = bias_ref[2:3, :], bias_ref[3:4, :]
    bobj, bp, brel = bias_ref[4:5, :], bias_ref[5:6, :], bias_ref[6:7, :]

    # ---- box path (FPN2MLP + object refinement head): once, at first R tile ----
    @pl.when(pl.program_id(0) == 0)
    def _():
        h = jnp.maximum(mm(pooled_ref[...], w_in_ref[0]) + b1, 0.0)
        roi = jnp.maximum(mm(h, w_sq_ref[0]) + b2, 0.0)
        roi_ref[...] = roi                          # (N_pad, 128) f32, resident output
        roi_sc[...] = roi.astype(bf16)              # carried across R tiles (scratch)
        refine_ref[...] = mm(roi, w_sq_ref[2]) + bobj

    # ---- union (relation) feature extractor on this R tile ----
    hu = jnp.maximum(mm(upooled_ref[...], w_in_ref[1]) + bu1, 0.0)
    uni = jnp.maximum(mm(hu, w_sq_ref[1]) + bu2, 0.0)

    # ---- pair gather: in-kernel one-hot (exact in bf16) x VMEM-resident roi ----
    pair_idx = idx_ref[...]                                        # (Rt, 2) int32
    r_tile, n_pad = pair_idx.shape[0], roi_sc.shape[0]
    cols = jax.lax.broadcasted_iota(jnp.int32, (r_tile, n_pad), 1)
    sel_sub = jnp.where(pair_idx[:, 0:1] == cols, 1.0, 0.0).astype(bf16)
    sel_obj = jnp.where(pair_idx[:, 1:2] == cols, 1.0, 0.0).astype(bf16)
    roi_b = roi_sc[...]
    sub_f = jnp.dot(sel_sub, roi_b, preferred_element_type=f32)    # (Rt, 128)
    obj_f = jnp.dot(sel_obj, roi_b, preferred_element_type=f32)

    # ---- predictor: relu(sub@Wps + obj@Wpo + bp) * union -> relation logits ----
    hp = jnp.maximum(mm(sub_f, w_sq_ref[3]) + mm(obj_f, w_sq_ref[4]) + bp, 0.0)
    rel_ref[...] = mm(hp * uni, w_sq_ref[5]) + brel


def fused_scenegraph(pooled, union_pooled, pair_idx, w_in, w_sq, biases, *, r_tile):
    n_pad, k_pad = pooled.shape
    r_pad = union_pooled.shape[0]
    d_pad = w_sq.shape[-1]
    assert r_pad % r_tile == 0
    n_steps = r_pad // r_tile

    d = d_pad
    flops = 2 * (n_pad * k_pad * d + 2 * n_pad * d * d         # box MLP + obj head
                 + r_pad * k_pad * d + r_pad * d * d            # union MLP
                 + 2 * r_pad * n_pad * d                        # one-hot pair gather
                 + 3 * r_pad * d * d)                           # pair MLP + rel head
    bytes_accessed = int(
        sum(int(a.size) * a.dtype.itemsize
            for a in (pooled, union_pooled, pair_idx, w_in, w_sq, biases))
        + (2 * n_pad * d_pad + r_pad * d_pad) * 4)              # f32 outputs

    grid_spec = pltpu.PrefetchScalarGridSpec(
        num_scalar_prefetch=0,
        grid=(n_steps,),
        in_specs=[
            pl.BlockSpec((n_pad, k_pad), lambda r: (0, 0)),     # pooled: resident
            pl.BlockSpec((r_tile, k_pad), lambda r: (r, 0)),    # union tile (pipelined)
            pl.BlockSpec((r_tile, 2), lambda r: (r, 0)),        # pair-index tile
            pl.BlockSpec(w_in.shape, lambda r: (0, 0, 0)),      # stacked 1st-layer weights
            pl.BlockSpec(w_sq.shape, lambda r: (0, 0, 0)),      # stacked 128x128 weights
            pl.BlockSpec(biases.shape, lambda r: (0, 0)),       # stacked biases
        ],
        out_specs=(
            pl.BlockSpec((n_pad, d_pad), lambda r: (0, 0)),     # roi features (resident)
            pl.BlockSpec((n_pad, d_pad), lambda r: (0, 0)),     # refine logits (resident)
            pl.BlockSpec((r_tile, d_pad), lambda r: (r, 0)),    # relation-logit tile
        ),
        scratch_shapes=[pltpu.VMEM((n_pad, d_pad), jnp.bfloat16)],  # roi carried across R
    )
    return pl.pallas_call(
        _fused_sgg_kernel,
        out_shape=(jax.ShapeDtypeStruct((n_pad, d_pad), jnp.float32),
                   jax.ShapeDtypeStruct((n_pad, d_pad), jnp.float32),
                   jax.ShapeDtypeStruct((r_pad, d_pad), jnp.float32)),
        grid_spec=grid_spec,
        compiler_params=pltpu.CompilerParams(
            # R axis carries the roi scratch across steps -> serial ("arbitrary").
            dimension_semantics=("arbitrary",),
            vmem_limit_bytes=32 * 1024 * 1024),
        cost_estimate=pl.CostEstimate(flops=int(flops), transcendentals=0,
                                      bytes_accessed=bytes_accessed),
    )(pooled, union_pooled, pair_idx, w_in, w_sq, biases)


# ---------------------------------------------------------------------------
# JAX glue: bilinear ROI pooling (ROIAlign approximation) — data-dependent gather
# ---------------------------------------------------------------------------
def roi_pool(feat, boxes, P):
    """feat: [C, H, W] f32; boxes: [N, 4] (x1, y1, x2, y2) in feature coords.
    Returns [N, C*P*P] flattened channel-major (matches torch NCHW .flatten())."""
    C, H, W = feat.shape

    def one(box):
        x1, y1, x2, y2 = box[0], box[1], box[2], box[3]
        bins = (jnp.arange(P, dtype=jnp.float32) + 0.5) / P
        ys = y1 + bins * (y2 - y1)
        xs = x1 + bins * (x2 - x1)
        yy = jnp.broadcast_to(ys[:, None], (P, P))
        xx = jnp.broadcast_to(xs[None, :], (P, P))
        y0f = jnp.floor(yy)
        x0f = jnp.floor(xx)
        wy = yy - y0f
        wx = xx - x0f
        y0 = jnp.clip(y0f.astype(jnp.int32), 0, H - 1)
        x0 = jnp.clip(x0f.astype(jnp.int32), 0, W - 1)
        y1i = jnp.clip(y0 + 1, 0, H - 1)
        x1i = jnp.clip(x0 + 1, 0, W - 1)
        f00 = feat[:, y0, x0]
        f01 = feat[:, y0, x1i]
        f10 = feat[:, y1i, x0]
        f11 = feat[:, y1i, x1i]
        out = (f00 * (1 - wy) * (1 - wx) + f01 * (1 - wy) * wx
               + f10 * wy * (1 - wx) + f11 * wy * wx)  # [C, P, P]
        return out.reshape(C * P * P)

    return jax.vmap(one)(boxes)


# ---------------------------------------------------------------------------
# SceneGraphHead (eval mode)
# ---------------------------------------------------------------------------
class SceneGraphHeadPallas:
    """Eval-mode SceneGraphHead: box feature extraction -> union feature
    extraction -> predictor (object refinement + relation logits), fused into
    one relation-row-tiled Pallas kernel with bf16 matmul operands."""

    def __init__(self, key, in_channels=4, pool=4, feat_dim=32,
                 n_obj_classes=8, n_rel_classes=16, r_tile=8):
        self.C, self.P, self.D = in_channels, pool, feat_dim
        self.n_obj, self.n_rel = n_obj_classes, n_rel_classes
        in_dim = in_channels * pool * pool
        self.in_dim = in_dim
        assert r_tile % _SUB == 0
        self.r_tile = r_tile
        assert feat_dim <= _LANE and n_obj_classes <= _LANE and n_rel_classes <= _LANE, \
            "larger heads need lane tiling (pad to 256 on v6e/v7x) + a K grid axis"

        ks = jax.random.split(key, 12)
        s = 0.05
        # box feature extractor (2-layer MLP)
        self.w1 = s * jax.random.normal(ks[0], (in_dim, feat_dim), jnp.float32)
        self.b1 = s * jax.random.normal(ks[1], (1, feat_dim), jnp.float32)
        self.w2 = s * jax.random.normal(ks[2], (feat_dim, feat_dim), jnp.float32)
        self.b2 = s * jax.random.normal(ks[3], (1, feat_dim), jnp.float32)
        # union (relation) feature extractor (its own 2-layer MLP)
        self.wu1 = s * jax.random.normal(ks[4], (in_dim, feat_dim), jnp.float32)
        self.bu1 = s * jax.random.normal(ks[5], (1, feat_dim), jnp.float32)
        self.wu2 = s * jax.random.normal(ks[6], (feat_dim, feat_dim), jnp.float32)
        self.bu2 = s * jax.random.normal(ks[7], (1, feat_dim), jnp.float32)
        # predictor
        self.wobj = s * jax.random.normal(ks[8], (feat_dim, n_obj_classes), jnp.float32)
        self.bobj = jnp.zeros((1, n_obj_classes), jnp.float32)
        self.wps = s * jax.random.normal(ks[9], (feat_dim, feat_dim), jnp.float32)
        self.wpo = s * jax.random.normal(ks[10], (feat_dim, feat_dim), jnp.float32)
        self.bp = jnp.zeros((1, feat_dim), jnp.float32)
        self.wrel = s * jax.random.normal(ks[11], (feat_dim, n_rel_classes), jnp.float32)
        self.brel = jnp.zeros((1, n_rel_classes), jnp.float32)

        # ---- lane-dense, bf16, STACKED parameters (padded rows/cols are zero) ----
        D_PAD = _LANE
        K_PAD = _round_up(in_dim, _LANE)
        self.D_PAD, self.K_PAD = D_PAD, K_PAD
        self.w_in_p = jnp.stack(
            [_pad2d(self.w1, K_PAD, D_PAD), _pad2d(self.wu1, K_PAD, D_PAD)]
        ).astype(jnp.bfloat16)                                       # (2, K_PAD, 128)
        self.w_sq_p = jnp.stack(
            [_pad2d(self.w2, D_PAD, D_PAD), _pad2d(self.wu2, D_PAD, D_PAD),
             _pad2d(self.wobj, D_PAD, D_PAD), _pad2d(self.wps, D_PAD, D_PAD),
             _pad2d(self.wpo, D_PAD, D_PAD), _pad2d(self.wrel, D_PAD, D_PAD)]
        ).astype(jnp.bfloat16)                                       # (6, 128, 128)
        biases = jnp.zeros((8, D_PAD), jnp.float32)                  # (8, 128) f32
        for i, b in enumerate([self.b1, self.b2, self.bu1, self.bu2,
                               self.bobj, self.bp, self.brel]):
            biases = biases.at[i, :b.shape[1]].set(b[0])
        self.bias_p = biases

    def __call__(self, features, boxes, rel_pair_idxs):
        # features: [1, C, H, W] (NCHW, B=1); boxes: [N, 4]; rel_pair_idxs: [R, 2]
        feat = features[0]
        N = boxes.shape[0]
        R = rel_pair_idxs.shape[0]

        # ---- ROI pooling (JAX glue, data-dependent gather) ----
        pooled = roi_pool(feat, boxes, self.P)                       # [N, C*P*P]

        # ---- union boxes (use_union_box == PREDICT_USE_VISION) ----
        sub_boxes = boxes[rel_pair_idxs[:, 0]]
        obj_boxes = boxes[rel_pair_idxs[:, 1]]
        union_boxes = jnp.stack([
            jnp.minimum(sub_boxes[:, 0], obj_boxes[:, 0]),
            jnp.minimum(sub_boxes[:, 1], obj_boxes[:, 1]),
            jnp.maximum(sub_boxes[:, 2], obj_boxes[:, 2]),
            jnp.maximum(sub_boxes[:, 3], obj_boxes[:, 3]),
        ], axis=1)
        union_pooled = roi_pool(feat, union_boxes, self.P)           # [R, C*P*P]

        # ---- pad rows to tile multiples, in_dim to lane multiples; cast bf16 ----
        N_pad = _round_up(max(N, 1), _SUB)
        R_pad = _round_up(max(R, 1), self.r_tile)
        pooled_p = _pad2d(pooled, N_pad, self.K_PAD).astype(jnp.bfloat16)
        union_p = _pad2d(union_pooled, R_pad, self.K_PAD).astype(jnp.bfloat16)
        # tiny (R_pad, 2) int32 pair-index tensor; padded rows -> index 0 (garbage
        # logits for rows >= R, sliced off below before any consumer).
        pair_idx = jnp.zeros((R_pad, 2), jnp.int32).at[:R].set(
            rel_pair_idxs.astype(jnp.int32))

        # ---- single fused Pallas launch (grid over relation-row tiles) ----
        roi_p, refine_p, rel_p = fused_scenegraph(
            pooled_p, union_p, pair_idx,
            self.w_in_p, self.w_sq_p, self.bias_p, r_tile=self.r_tile)

        # slice padded rows/columns off BEFORE anything downstream (softmax-safe)
        roi_features = roi_p[:N, :self.D]
        refine_logits = refine_p[:N, :self.n_obj]
        relation_logits = rel_p[:R, :self.n_rel]

        # eval-mode return shape mirrors (roi_features, result, {})
        return roi_features, (relation_logits, refine_logits, rel_pair_idxs), {}


# ---------------------------------------------------------------------------
# Pure-JAX f32 reference (unpadded) — kernel is bf16-class, checked at 5e-2
# ---------------------------------------------------------------------------
def _reference(head, pooled, union_pooled, rel_pair_idxs):
    relu = lambda x: jnp.maximum(x, 0.0)
    hp_prec = jax.lax.Precision.HIGHEST
    dot = lambda a, b: jnp.dot(a, b, precision=hp_prec)
    roi = relu(dot(relu(dot(pooled, head.w1) + head.b1), head.w2) + head.b2)
    uni = relu(dot(relu(dot(union_pooled, head.wu1) + head.bu1), head.wu2) + head.bu2)
    refine = dot(roi, head.wobj) + head.bobj
    sub = roi[rel_pair_idxs[:, 0]]
    obj = roi[rel_pair_idxs[:, 1]]
    h = relu(dot(sub, head.wps) + dot(obj, head.wpo) + head.bp)
    rel = dot(h * uni, head.wrel) + head.brel
    return roi, refine, rel


# ---------------------------------------------------------------------------
if __name__ == "__main__":
    key = jax.random.PRNGKey(0)
    k_feat, k_params = jax.random.split(key)

    B, C, H, W = 1, 4, 16, 16
    features = jax.random.normal(k_feat, (B, C, H, W), jnp.float32)  # NCHW

    # N=4 proposal boxes (x1, y1, x2, y2) in feature-map coordinates
    boxes = jnp.array([
        [1.0, 1.0, 6.0, 7.0],
        [4.0, 3.0, 12.0, 10.0],
        [0.5, 8.0, 9.0, 15.0],
        [8.0, 2.0, 15.0, 14.0],
    ], jnp.float32)
    N = boxes.shape[0]

    # eval-mode prepare_test_pairs: all ordered pairs i != j -> R = N*(N-1) = 12
    ii, jj = jnp.meshgrid(jnp.arange(N), jnp.arange(N), indexing="ij")
    mask = (ii != jj).reshape(-1)
    rel_pair_idxs = jnp.stack([ii.reshape(-1)[mask], jj.reshape(-1)[mask]], axis=1)

    head = SceneGraphHeadPallas(k_params, in_channels=C, pool=4, feat_dim=32,
                                n_obj_classes=8, n_rel_classes=16, r_tile=8)

    roi_features, (relation_logits, refine_logits, pairs), losses = head(
        features, boxes, rel_pair_idxs)
    jax.block_until_ready((roi_features, relation_logits, refine_logits))

    assert roi_features.shape == (N, 32)
    assert refine_logits.shape == (N, 8)
    assert relation_logits.shape == (rel_pair_idxs.shape[0], 16)

    # sanity check against the pure-JAX f32 reference (bf16-class tolerance)
    feat0 = features[0]
    pooled_ref = roi_pool(feat0, boxes, head.P)
    sub_b = boxes[rel_pair_idxs[:, 0]]
    obj_b = boxes[rel_pair_idxs[:, 1]]
    union_b = jnp.stack([
        jnp.minimum(sub_b[:, 0], obj_b[:, 0]),
        jnp.minimum(sub_b[:, 1], obj_b[:, 1]),
        jnp.maximum(sub_b[:, 2], obj_b[:, 2]),
        jnp.maximum(sub_b[:, 3], obj_b[:, 3]),
    ], axis=1)
    union_pooled_ref = roi_pool(feat0, union_b, head.P)
    roi_r, refine_r, rel_r = _reference(head, pooled_ref, union_pooled_ref, rel_pair_idxs)
    assert jnp.allclose(roi_features, roi_r, atol=5e-2, rtol=5e-2)
    assert jnp.allclose(refine_logits, refine_r, atol=5e-2, rtol=5e-2)
    assert jnp.allclose(relation_logits, rel_r, atol=5e-2, rtol=5e-2)

    print("KERNEL_OK")
</pallas_src>

<mosaic_0001>
module attributes {stable_mosaic.version = 11 : i64} {
  func.func @_fused_sgg_kernel(%arg0: i32, %arg1: memref<8x128xbf16, #tpu.memory_space<vmem>>, %arg2: memref<8x128xbf16, #tpu.memory_space<vmem>>, %arg3: memref<8x2xi32, #tpu.memory_space<vmem>>, %arg4: memref<2x128x128xbf16, #tpu.memory_space<vmem>>, %arg5: memref<6x128x128xbf16, #tpu.memory_space<vmem>>, %arg6: memref<8x128xf32, #tpu.memory_space<vmem>>, %arg7: memref<8x128xf32, #tpu.memory_space<vmem>>, %arg8: memref<8x128xf32, #tpu.memory_space<vmem>>, %arg9: memref<8x128xf32, #tpu.memory_space<vmem>>, %arg10: memref<8x128xbf16, #tpu.memory_space<vmem>>) attributes {dimension_semantics = [#tpu.dimension_semantics<arbitrary>], iteration_bounds = array<i64: 2>, scalar_prefetch = 0 : i64, scratch_operands = 1 : i64, tpu.core_type = #tpu.core_type<tc>, window_params = [{pipeline_mode = #tpu.pipeline_mode<synchronous>, transform_indices = @transform_0, window_bounds = array<i64: 8, 128>}, {transform_indices = @transform_1, window_bounds = array<i64: 8, 128>}, {transform_indices = @transform_2, window_bounds = array<i64: 8, 2>}, {pipeline_mode = #tpu.pipeline_mode<synchronous>, transform_indices = @transform_3, window_bounds = array<i64: 2, 128, 128>}, {pipeline_mode = #tpu.pipeline_mode<synchronous>, transform_indices = @transform_4, window_bounds = array<i64: 6, 128, 128>}, {pipeline_mode = #tpu.pipeline_mode<synchronous>, transform_indices = @transform_5, window_bounds = array<i64: 8, 128>}, {pipeline_mode = #tpu.pipeline_mode<synchronous>, transform_indices = @transform_6, window_bounds = array<i64: 8, 128>}, {pipeline_mode = #tpu.pipeline_mode<synchronous>, transform_indices = @transform_7, window_bounds = array<i64: 8, 128>}, {transform_indices = @transform_8, window_bounds = array<i64: 8, 128>}]} {
    %c0 = arith.constant 0 : index
    %c0_0 = arith.constant 0 : index
    %0 = vector.load %arg6[%c0, %c0_0] : memref<8x128xf32, #tpu.memory_space<vmem>>, vector<1x128xf32>
    %c1 = arith.constant 1 : index
    %c0_1 = arith.constant 0 : index
    %1 = vector.load %arg6[%c1, %c0_1] : memref<8x128xf32, #tpu.memory_space<vmem>>, vector<1x128xf32>
    %c2 = arith.constant 2 : index
    %c0_2 = arith.constant 0 : index
    %2 = vector.load %arg6[%c2, %c0_2] : memref<8x128xf32, #tpu.memory_space<vmem>>, vector<1x128xf32>
    %c3 = arith.constant 3 : index
    %c0_3 = arith.constant 0 : index
    %3 = vector.load %arg6[%c3, %c0_3] : memref<8x128xf32, #tpu.memory_space<vmem>>, vector<1x128xf32>
    %c4 = arith.constant 4 : index
    %c0_4 = arith.constant 0 : index
    %4 = vector.load %arg6[%c4, %c0_4] : memref<8x128xf32, #tpu.memory_space<vmem>>, vector<1x128xf32>
    %c5 = arith.constant 5 : index
    %c0_5 = arith.constant 0 : index
    %5 = vector.load %arg6[%c5, %c0_5] : memref<8x128xf32, #tpu.memory_space<vmem>>, vector<1x128xf32>
    %c6 = arith.constant 6 : index
    %c0_6 = arith.constant 0 : index
    %6 = vector.load %arg6[%c6, %c0_6] : memref<8x128xf32, #tpu.memory_space<vmem>>, vector<1x128xf32>
    %c0_i32 = arith.constant 0 : i32
    %7 = arith.cmpi eq, %arg0, %c0_i32 : i32
    %8 = arith.extui %7 : i1 to i32
    %c0_i32_7 = arith.constant 0 : i32
    %9 = arith.cmpi ne, %8, %c0_i32_7 : i32
    scf.if %9 {
      %c0_44 = arith.constant 0 : index
      %c0_45 = arith.constant 0 : index
      %66 = vector.load %arg1[%c0_44, %c0_45] : memref<8x128xbf16, #tpu.memory_space<vmem>>, vector<8x128xbf16>
      %c0_46 = arith.constant 0 : index
      %c0_47 = arith.constant 0 : index
      %c0_48 = arith.constant 0 : index
      %67 = vector.load %arg4[%c0_46, %c0_47, %c0_48] : memref<2x128x128xbf16, #tpu.memory_space<vmem>>, vector<1x128x128xbf16>
      %68 = vector.shape_cast %67 : vector<1x128x128xbf16> to vector<128x128xbf16>
      %cst_49 = arith.constant dense<0.000000e+00> : vector<8x128xf32>
      %69 = tpu.matmul %66, %68, %cst_49 {dimension_numbers = #tpu.dot_dimension_numbers<[1], [0], [0], [1], [0, 0, 1, 1], [], []>} : vector<8x128xbf16>, vector<128x128xbf16>, vector<8x128xf32> -> vector<8x128xf32>
      %70 = vector.broadcast %0 : vector<1x128xf32> to vector<8x128xf32>
      %71 = arith.addf %69, %70 : vector<8x128xf32>
      %cst_50 = arith.constant 0.000000e+00 : f32
      %72 = vector.broadcast %cst_50 : f32 to vector<8x128xf32>
      %73 = arith.maximumf %71, %72 : vector<8x128xf32>
      %c0_51 = arith.constant 0 : index
      %c0_52 = arith.constant 0 : index
      %c0_53 = arith.constant 0 : index
      %74 = vector.load %arg5[%c0_51, %c0_52, %c0_53] : memref<6x128x128xbf16, #tpu.memory_space<vmem>>, vector<1x128x128xbf16>
      %75 = vector.shape_cast %74 : vector<1x128x128xbf16> to vector<128x128xbf16>
      %76 = arith.truncf %73 : vector<8x128xf32> to vector<8x128xbf16>
      %cst_54 = arith.constant dense<0.000000e+00> : vector<8x128xf32>
      %77 = tpu.matmul %76, %75, %cst_54 {dimension_numbers = #tpu.dot_dimension_numbers<[1], [0], [0], [1], [0, 0, 1, 1], [], []>} : vector<8x128xbf16>, vector<128x128xbf16>, vector<8x128xf32> -> vector<8x128xf32>
      %78 = vector.broadcast %1 : vector<1x128xf32> to vector<8x128xf32>
      %79 = arith.addf %77, %78 : vector<8x128xf32>
      %cst_55 = arith.constant 0.000000e+00 : f32
      %80 = vector.broadcast %cst_55 : f32 to vector<8x128xf32>
      %81 = arith.maximumf %79, %80 : vector<8x128xf32>
      %c0_56 = arith.constant 0 : index
      %c0_57 = arith.constant 0 : index
      %82 = vector.load %arg7[%c0_56, %c0_57] : memref<8x128xf32, #tpu.memory_space<vmem>>, vector<8x128xf32>
      tpu.vector_store %arg7[%c0_56, %c0_57], %81 {strides = array<i32>} : memref<8x128xf32, #tpu.memory_space<vmem>>, vector<8x128xf32>,
      %83 = arith.truncf %81 : vector<8x128xf32> to vector<8x128xbf16>
      %c0_58 = arith.constant 0 : index
      %c0_59 = arith.constant 0 : index
      %84 = vector.load %arg10[%c0_58, %c0_59] : memref<8x128xbf16, #tpu.memory_space<vmem>>, vector<8x128xbf16>
      tpu.vector_store %arg10[%c0_58, %c0_59], %83 {strides = array<i32>} : memref<8x128xbf16, #tpu.memory_space<vmem>>, vector<8x128xbf16>,
      %c2_60 = arith.constant 2 : index
      %c0_61 = arith.constant 0 : index
      %c0_62 = arith.constant 0 : index
      %85 = vector.load %arg5[%c2_60, %c0_61, %c0_62] : memref<6x128x128xbf16, #tpu.memory_space<vmem>>, vector<1x128x128xbf16>
      %86 = vector.shape_cast %85 : vector<1x128x128xbf16> to vector<128x128xbf16>
      %87 = arith.truncf %81 : vector<8x128xf32> to vector<8x128xbf16>
      %cst_63 = arith.constant dense<0.000000e+00> : vector<8x128xf32>
      %88 = tpu.matmul %87, %86, %cst_63 {dimension_numbers = #tpu.dot_dimension_numbers<[1], [0], [0], [1], [0, 0, 1, 1], [], []>} : vector<8x128xbf16>, vector<128x128xbf16>, vector<8x128xf32> -> vector<8x128xf32>
      %89 = vector.broadcast %4 : vector<1x128xf32> to vector<8x128xf32>
      %90 = arith.addf %88, %89 : vector<8x128xf32>
      %c0_64 = arith.constant 0 : index
      %c0_65 = arith.constant 0 : index
      %91 = vector.load %arg8[%c0_64, %c0_65] : memref<8x128xf32, #tpu.memory_space<vmem>>, vector<8x128xf32>
      tpu.vector_store %arg8[%c0_64, %c0_65], %90 {strides = array<i32>} : memref<8x128xf32, #tpu.memory_space<vmem>>, vector<8x128xf32>,
    } else {
    }
    %c0_8 = arith.constant 0 : index
    %c0_9 = arith.constant 0 : index
    %10 = vector.load %arg2[%c0_8, %c0_9] : memref<8x128xbf16, #tpu.memory_space<vmem>>, vector<8x128xbf16>
    %c1_10 = arith.constant 1 : index
    %c0_11 = arith.constant 0 : index
    %c0_12 = arith.constant 0 : index
    %11 = vector.load %arg4[%c1_10, %c0_11, %c0_12] : memref<2x128x128xbf16, #tpu.memory_space<vmem>>, vector<1x128x128xbf16>
    %12 = vector.shape_cast %11 : vector<1x128x128xbf16> to vector<128x128xbf16>
    %cst = arith.constant dense<0.000000e+00> : vector<8x128xf32>
    %13 = tpu.matmul %10, %12, %cst {dimension_numbers = #tpu.dot_dimension_numbers<[1], [0], [0], [1], [0, 0, 1, 1], [], []>} : vector<8x128xbf16>, vector<128x128xbf16>, vector<8x128xf32> -> vector<8x128xf32>
    %14 = vector.broadcast %2 : vector<1x128xf32> to vector<8x128xf32>
    %15 = arith.addf %13, %14 : vector<8x128xf32>
    %cst_13 = arith.constant 0.000000e+00 : f32
    %16 = vector.broadcast %cst_13 : f32 to vector<8x128xf32>
    %17 = arith.maximumf %15, %16 : vector<8x128xf32>
    %c1_14 = arith.constant 1 : index
    %c0_15 = arith.constant 0 : index
    %c0_16 = arith.constant 0 : index
    %18 = vector.load %arg5[%c1_14, %c0_15, %c0_16] : memref<6x128x128xbf16, #tpu.memory_space<vmem>>, vector<1x128x128xbf16>
    %19 = vector.shape_cast %18 : vector<1x128x128xbf16> to vector<128x128xbf16>
    %20 = arith.truncf %17 : vector<8x128xf32> to vector<8x128xbf16>
    %cst_17 = arith.constant dense<0.000000e+00> : vector<8x128xf32>
    %21 = tpu.matmul %20, %19, %cst_17 {dimension_numbers = #tpu.dot_dimension_numbers<[1], [0], [0], [1], [0, 0, 1, 1], [], []>} : vector<8x128xbf16>, vector<128x128xbf16>, vector<8x128xf32> -> vector<8x128xf32>
    %22 = vector.broadcast %3 : vector<1x128xf32> to vector<8x128xf32>
    %23 = arith.addf %21, %22 : vector<8x128xf32>
    %cst_18 = arith.constant 0.000000e+00 : f32
    %24 = vector.broadcast %cst_18 : f32 to vector<8x128xf32>
    %25 = arith.maximumf %23, %24 : vector<8x128xf32>
    %c0_19 = arith.constant 0 : index
    %c0_20 = arith.constant 0 : index
    %26 = vector.load %arg3[%c0_19, %c0_20] : memref<8x2xi32, #tpu.memory_space<vmem>>, vector<8x2xi32>
    %27 = tpu.iota {dimensions = array<i32: 1>} : vector<8x8xi32>
    %28 = vector.extract_strided_slice %26 {offsets = [0, 0], sizes = [8, 1], strides = [1, 1]} : vector<8x2xi32> to vector<8x1xi32>
    %29 = vector.broadcast %28 : vector<8x1xi32> to vector<8x8xi32>
    %30 = arith.cmpi eq, %29, %27 : vector<8x8xi32>
    %cst_21 = arith.constant 1.000000e+00 : f32
    %cst_22 = arith.constant 0.000000e+00 : f32
    %31 = vector.broadcast %cst_21 : f32 to vector<8x8xf32>
    %32 = vector.broadcast %cst_22 : f32 to vector<8x8xf32>
    %33 = arith.select %30, %31, %32 : vector<8x8xi1>, vector<8x8xf32>
    %34 = arith.truncf %33 : vector<8x8xf32> to vector<8x8xbf16>
    %35 = vector.extract_strided_slice %26 {offsets = [0, 1], sizes = [8, 1], strides = [1, 1]} : vector<8x2xi32> to vector<8x1xi32>
    %36 = vector.broadcast %35 : vector<8x1xi32> to vector<8x8xi32>
    %37 = arith.cmpi eq, %36, %27 : vector<8x8xi32>
    %cst_23 = arith.constant 1.000000e+00 : f32
    %cst_24 = arith.constant 0.000000e+00 : f32
    %38 = vector.broadcast %cst_23 : f32 to vector<8x8xf32>
    %39 = vector.broadcast %cst_24 : f32 to vector<8x8xf32>
    %40 = arith.select %37, %38, %39 : vector<8x8xi1>, vector<8x8xf32>
    %41 = arith.truncf %40 : vector<8x8xf32> to vector<8x8xbf16>
    %c0_25 = arith.constant 0 : index
    %c0_26 = arith.constant 0 : index
    %42 = vector.load %arg10[%c0_25, %c0_26] : memref<8x128xbf16, #tpu.memory_space<vmem>>, vector<8x128xbf16>
    %cst_27 = arith.constant dense<0.000000e+00> : vector<8x128xf32>
    %43 = tpu.matmul %34, %42, %cst_27 {dimension_numbers = #tpu.dot_dimension_numbers<[1], [0], [0], [1], [0, 0, 1, 1], [], []>} : vector<8x8xbf16>, vector<8x128xbf16>, vector<8x128xf32> -> vector<8x128xf32>
    %cst_28 = arith.constant dense<0.000000e+00> : vector<8x128xf32>
    %44 = tpu.matmul %41, %42, %cst_28 {dimension_numbers = #tpu.dot_dimension_numbers<[1], [0], [0], [1], [0, 0, 1, 1], [], []>} : vector<8x8xbf16>, vector<8x128xbf16>, vector<8x128xf32> -> vector<8x128xf32>
    %c3_29 = arith.constant 3 : index
    %c0_30 = arith.constant 0 : index
    %c0_31 = arith.constant 0 : index
    %45 = vector.load %arg5[%c3_29, %c0_30, %c0_31] : memref<6x128x128xbf16, #tpu.memory_space<vmem>>, vector<1x128x128xbf16>
    %46 = vector.shape_cast %45 : vector<1x128x128xbf16> to vector<128x128xbf16>
    %47 = arith.truncf %43 : vector<8x128xf32> to vector<8x128xbf16>
    %cst_32 = arith.constant dense<0.000000e+00> : vector<8x128xf32>
    %48 = tpu.matmul %47, %46, %cst_32 {dimension_numbers = #tpu.dot_dimension_numbers<[1], [0], [0], [1], [0, 0, 1, 1], [], []>} : vector<8x128xbf16>, vector<128x128xbf16>, vector<8x128xf32> -> vector<8x128xf32>
    %c4_33 = arith.constant 4 : index
    %c0_34 = arith.constant 0 : index
    %c0_35 = arith.constant 0 : index
    %49 = vector.load %arg5[%c4_33, %c0_34, %c0_35] : memref<6x128x128xbf16, #tpu.memory_space<vmem>>, vector<1x128x128xbf16>
    %50 = vector.shape_cast %49 : vector<1x128x128xbf16> to vector<128x128xbf16>
    %51 = arith.truncf %44 : vector<8x128xf32> to vector<8x128xbf16>
    %cst_36 = arith.constant dense<0.000000e+00> : vector<8x128xf32>
    %52 = tpu.matmul %51, %50, %cst_36 {dimension_numbers = #tpu.dot_dimension_numbers<[1], [0], [0], [1], [0, 0, 1, 1], [], []>} : vector<8x128xbf16>, vector<128x128xbf16>, vector<8x128xf32> -> vector<8x128xf32>
    %53 = arith.addf %48, %52 : vector<8x128xf32>
    %54 = vector.broadcast %5 : vector<1x128xf32> to vector<8x128xf32>
    %55 = arith.addf %53, %54 : vector<8x128xf32>
    %cst_37 = arith.constant 0.000000e+00 : f32
    %56 = vector.broadcast %cst_37 : f32 to vector<8x128xf32>
    %57 = arith.maximumf %55, %56 : vector<8x128xf32>
    %58 = arith.mulf %57, %25 : vector<8x128xf32>
    %c5_38 = arith.constant 5 : index
    %c0_39 = arith.constant 0 : index
    %c0_40 = arith.constant 0 : index
    %59 = vector.load %arg5[%c5_38, %c0_39, %c0_40] : memref<6x128x128xbf16, #tpu.memory_space<vmem>>, vector<1x128x128xbf16>
    %60 = vector.shape_cast %59 : vector<1x128x128xbf16> to vector<128x128xbf16>
    %61 = arith.truncf %58 : vector<8x128xf32> to vector<8x128xbf16>
    %cst_41 = arith.constant dense<0.000000e+00> : vector<8x128xf32>
    %62 = tpu.matmul %61, %60, %cst_41 {dimension_numbers = #tpu.dot_dimension_numbers<[1], [0], [0], [1], [0, 0, 1, 1], [], []>} : vector<8x128xbf16>, vector<128x128xbf16>, vector<8x128xf32> -> vector<8x128xf32>
    %63 = vector.broadcast %6 : vector<1x128xf32> to vector<8x128xf32>
    %64 = arith.addf %62, %63 : vector<8x128xf32>
    %c0_42 = arith.constant 0 : index
    %c0_43 = arith.constant 0 : index
    %65 = vector.load %arg9[%c0_42, %c0_43] : memref<8x128xf32, #tpu.memory_space<vmem>>, vector<8x128xf32>
    tpu.vector_store %arg9[%c0_42, %c0_43], %64 {strides = array<i32>} : memref<8x128xf32, #tpu.memory_space<vmem>>, vector<8x128xf32>,
    return
  }
  func.func @transform_0(%arg0: i32) -> (i32, i32) {
    %c0_i32 = arith.constant 0 : i32
    %c0_i32_0 = arith.constant 0 : i32
    %c0_i32_1 = arith.constant 0 : i32
    return %c0_i32, %c0_i32_0 : i32, i32
  }
  func.func @transform_1(%arg0: i32) -> (i32, i32) {
    %c0_i32 = arith.constant 0 : i32
    %c0_i32_0 = arith.constant 0 : i32
    return %arg0, %c0_i32 : i32, i32
  }
  func.func @transform_2(%arg0: i32) -> (i32, i32) {
    %c0_i32 = arith.constant 0 : i32
    %c0_i32_0 = arith.constant 0 : i32
    return %arg0, %c0_i32 : i32, i32
  }
  func.func @transform_3(%arg0: i32) -> (i32, i32, i32) {
    %c0_i32 = arith.constant 0 : i32
    %c0_i32_0 = arith.constant 0 : i32
    %c0_i32_1 = arith.constant 0 : i32
    %c0_i32_2 = arith.constant 0 : i32
    return %c0_i32, %c0_i32_0, %c0_i32_1 : i32, i32, i32
  }
  func.func @transform_4(%arg0: i32) -> (i32, i32, i32) {
    %c0_i32 = arith.constant 0 : i32
    %c0_i32_0 = arith.constant 0 : i32
    %c0_i32_1 = arith.constant 0 : i32
    %c0_i32_2 = arith.constant 0 : i32
    return %c0_i32, %c0_i32_0, %c0_i32_1 : i32, i32, i32
  }
  func.func @transform_5(%arg0: i32) -> (i32, i32) {
    %c0_i32 = arith.constant 0 : i32
    %c0_i32_0 = arith.constant 0 : i32
    %c0_i32_1 = arith.constant 0 : i32
    return %c0_i32, %c0_i32_0 : i32, i32
  }
  func.func @transform_6(%arg0: i32) -> (i32, i32) {
    %c0_i32 = arith.constant 0 : i32
    %c0_i32_0 = arith.constant 0 : i32
    %c0_i32_1 = arith.constant 0 : i32
    return %c0_i32, %c0_i32_0 : i32, i32
  }
  func.func @transform_7(%arg0: i32) -> (i32, i32) {
    %c0_i32 = arith.constant 0 : i32
    %c0_i32_0 = arith.constant 0 : i32
    %c0_i32_1 = arith.constant 0 : i32
    return %c0_i32, %c0_i32_0 : i32, i32
  }
  func.func @transform_8(%arg0: i32) -> (i32, i32) {
    %c0_i32 = arith.constant 0 : i32
    %c0_i32_0 = arith.constant 0 : i32
    return %arg0, %c0_i32 : i32, i32
  }
}

</mosaic_0001>

<llo_original>
// kernel: tpu_custom_call.1
$region0: #{tpu_custom_call.1}
  #allocation0 [shape = 'u32[]', space=smem, size = 0x4, offset = 0x4, fixed_abs, tag = 'smem constant byte address 0x4 - core index']
  #allocation1 [shape = 'u32[144,128]{1,0:T(1,128)}', space=vmem, size = 0x12000, scoped, tag = 'internal scratch']
  #allocation2 [shape = 'bf16[8,128]{1,0:T(8,128)(2,1)}', space=vmem, size = 0x800, scoped, tag = 'scratch operand']
  %s0 = inlined_call_operand.hbm [shape: bf16[8,128], index: 0, kind: input, shape index: {}]
  %s1 = inlined_call_operand.vmem [shape: bf16[16,128], index: 1, kind: input, shape index: {}]
  %s2 = inlined_call_operand.vmem [shape: s32[16,2], index: 2, kind: input, shape index: {}]
  %s3 = inlined_call_operand.hbm [shape: bf16[2,128,128], index: 3, kind: input, shape index: {}]
  %s4 = inlined_call_operand.hbm [shape: bf16[6,128,128], index: 4, kind: input, shape index: {}]
  %s5 = inlined_call_operand.vmem [shape: f32[8,128], index: 5, kind: input, shape index: {}]
  %s6 = inlined_call_operand.hbm [shape: f32[8,128], index: 6, kind: output, shape index: {0}]
  %s7 = inlined_call_operand.hbm [shape: f32[8,128], index: 7, kind: output, shape index: {1}]
  %s8 = inlined_call_operand.hbm [shape: f32[16,128], index: 8, kind: output, shape index: {2}]
  %9 = xla_tuple %s6, %s7, %s8
  %s10 = sld [smem:[#allocation0]]
  $region89: #{tpu_custom_call.1} parent=0
    _
  %s12 = ssub.s32 1, %s10
  %s13 = scalar_select 0, %s12, %s10
  $region1: #{tpu_custom_call.1} parent=0
    #allocation3 [shape = 'u8[2048]{0}', space=vmem, size = 0x800, scoped, tag = 'input window, operand 0, single buffered']
    #allocation4 [shape = 's32[2]{0}', space=sflag, size = 0x8, scoped, tag = 'scoped memory for tpu_custom_call.1']
    #allocation5 [shape = 's32[2]{0}', space=sflag, size = 0x8, scoped, tag = 'scoped memory for tpu_custom_call.1']
    #allocation6 [shape = 'u8[65536]{0}', space=vmem, size = 0x10000, scoped, tag = 'input window, operand 3, single buffered']
    #allocation7 [shape = 's32[1]{0}', space=sflag, size = 0x4, scoped, tag = 'scoped memory for tpu_custom_call.1']
    #allocation8 [shape = 'u8[196608]{0}', space=vmem, size = 0x30000, scoped, tag = 'input window, operand 4, single buffered']
    #allocation9 [shape = 'u8[4096]{0}', space=vmem, size = 0x1000, scoped, tag = 'output window, operand 0, single buffered']
    #allocation10 [shape = 'u8[4096]{0}', space=vmem, size = 0x1000, scoped, tag = 'output window, operand 1, single buffered']
    #allocation11 [shape = 's32[1]{0}', space=sflag, size = 0x4, scoped, tag = 'scoped memory for tpu_custom_call.1']
    #allocation12 [shape = 'u8[8192]{0}', space=vmem, size = 0x2000, scoped, tag = 'output window, operand 2']
    %14 = vsyncpa [#allocation4], 0
    %15 = vsyncpa [#allocation7], 0
    %16 = vsyncpa [#allocation5], 0
    %17 = vsyncpa [#allocation11], 0
    loop: start=0, step=1, limit=4
    $region2: #{tpu_custom_call.1} parent=1 // loop_pre_header
      _
    $region3: #{tpu_custom_call.1} parent=1 // loop_header
      %s19 = sphi 0, %s23
      %p20 = scmp.ge.s32.totalorder %s19, 4
      %s27 = sphi 0, %s27
      %s29 = sphi 0, %s27
      %s30 = sphi 0, %s29
      %s44 = sphi 0, %s30
      %s50 = sphi 0, %s52
      %s53 = sphi 0, %s50
      %s54 = sphi 0, %s53
      %s70 = sphi 0, %s54
      %s76 = sphi 0, %s78
      %s79 = sphi 0, %s76
      %s80 = sphi 0, %s79
      %s96 = sphi 0, %s80
      %s100 = sphi 0, %s100
      %s102 = sphi 0, %s100
      %s103 = sphi 0, %s102
      %s117 = sphi 0, %s103
      %s121 = sphi 0, %s121
      %s123 = sphi 0, %s121
      %s124 = sphi 0, %s123
      %s138 = sphi 0, %s124
      %s142 = sphi 0, %s142
      %s144 = sphi 0, %s142
      %s145 = sphi 0, %s144
      %s159 = sphi 0, %s145
      %s163 = sphi 0, %s163
      %s165 = sphi 0, %s163
      %s166 = sphi 0, %s165
      %s180 = sphi 0, %s166
      %s184 = sphi 0, %s184
      %s186 = sphi 0, %s184
      %s187 = sphi 0, %s186
      %s201 = sphi 0, %s187
      %s207 = sphi 0, %s209
      %s210 = sphi 0, %s207
      %s211 = sphi 0, %s210
      %s227 = sphi 0, %s211
    $region4: #{tpu_custom_call.1} parent=1 // loop_header_branch
      %22 = sbr.rel (%p20) target = $region8
    $region5: #{tpu_custom_call.1} parent=1 // loop_body
      %s24 = ssub.s32 %s19, 1
      %s25 = ssub.s32 %s19, 2
      %s26 = sadd.s32 %s19, 1
      %s28 = sadd.s32 %s27, 1
      %p31 = scmp.eq.s32.totalorder %s19, 1
      %p32 = scmp.ne.s32.totalorder %s27, %s29
      %p33 = scmp.eq.s32.totalorder %s19, 0
      %p34 = por %p32, %p33
      %p35 = scmp.ne.s32.totalorder %s27, %s29
      %p36 = scmp.eq.s32.totalorder %s24, 1
      %p37 = por %p35, %p36
      %p38 = scmp.ne.s32.totalorder %s29, %s30
      %p39 = scmp.eq.s32.totalorder %s24, 0
      %p40 = por %p38, %p39
      %p41 = scmp.ne.s32.totalorder %s29, %s30
      %p42 = scmp.eq.s32.totalorder %s25, 1
      %p43 = por %p41, %p42
      %p45 = scmp.ne.s32.totalorder %s30, %s44
      %p46 = scmp.eq.s32.totalorder %s25, 0
      %p47 = por %p45, %p46
      %s48 = ssub.s32 %s19, %s26
      %p49 = scmp.eq.s32.totalorder %s48, 0
      %s51 = sadd.s32 %s50, 1
      %s52 = scalar_select %p49, %s50, %s51
      %p55 = pneg %p49
      %p56 = scmp.eq.s32.totalorder %s19, 1
      %p57 = por %p55, %p56
      %p58 = scmp.ne.s32.totalorder %s50, %s53
      %p59 = scmp.eq.s32.totalorder %s19, 0
      %p60 = por %p58, %p59
      %p61 = scmp.ne.s32.totalorder %s50, %s53
      %p62 = scmp.eq.s32.totalorder %s24, 1
      %p63 = por %p61, %p62
      %p64 = scmp.ne.s32.totalorder %s53, %s54
      %p65 = scmp.eq.s32.totalorder %s24, 0
      %p66 = por %p64, %p65
      %p67 = scmp.ne.s32.totalorder %s53, %s54
      %p68 = scmp.eq.s32.totalorder %s25, 1
      %p69 = por %p67, %p68
      %p71 = scmp.ne.s32.totalorder %s54, %s70
      %p72 = scmp.eq.s32.totalorder %s25, 0
      %p73 = por %p71, %p72
      %s74 = ssub.s32 %s19, %s26
      %p75 = scmp.eq.s32.totalorder %s74, 0
      %s77 = sadd.s32 %s76, 1
      %s78 = scalar_select %p75, %s76, %s77
      %p81 = pneg %p75
      %p82 = scmp.eq.s32.totalorder %s19, 1
      %p83 = por %p81, %p82
      %p84 = scmp.ne.s32.totalorder %s76, %s79
      %p85 = scmp.eq.s32.totalorder %s19, 0
      %p86 = por %p84, %p85
      %p87 = scmp.ne.s32.totalorder %s76, %s79
      %p88 = scmp.eq.s32.totalorder %s24, 1
      %p89 = por %p87, %p88
      %p90 = scmp.ne.s32.totalorder %s79, %s80
      %p91 = scmp.eq.s32.totalorder %s24, 0
      %p92 = por %p90, %p91
      %p93 = scmp.ne.s32.totalorder %s79, %s80
      %p94 = scmp.eq.s32.totalorder %s25, 1
      %p95 = por %p93, %p94
      %p97 = scmp.ne.s32.totalorder %s80, %s96
      %p98 = scmp.eq.s32.totalorder %s25, 0
      %p99 = por %p97, %p98
      %s101 = sadd.s32 %s100, 1
      %p104 = scmp.eq.s32.totalorder %s19, 1
      %p105 = scmp.ne.s32.totalorder %s100, %s102
      %p106 = scmp.eq.s32.totalorder %s19, 0
      %p107 = por %p105, %p106
      %p108 = scmp.ne.s32.totalorder %s100, %s102
      %p109 = scmp.eq.s32.totalorder %s24, 1
      %p110 = por %p108, %p109
      %p111 = scmp.ne.s32.totalorder %s102, %s103
      %p112 = scmp.eq.s32.totalorder %s24, 0
      %p113 = por %p111, %p112
      %p114 = scmp.ne.s32.totalorder %s102, %s103
      %p115 = scmp.eq.s32.totalorder %s25, 1
      %p116 = por %p114, %p115
      %p118 = scmp.ne.s32.totalorder %s103, %s117
      %p119 = scmp.eq.s32.totalorder %s25, 0
      %p120 = por %p118, %p119
      %s122 = sadd.s32 %s121, 1
      %p125 = scmp.eq.s32.totalorder %s19, 1
      %p126 = scmp.ne.s32.totalorder %s121, %s123
      %p127 = scmp.eq.s32.totalorder %s19, 0
      %p128 = por %p126, %p127
      %p129 = scmp.ne.s32.totalorder %s121, %s123
      %p130 = scmp.eq.s32.totalorder %s24, 1
      %p131 = por %p129, %p130
      %p132 = scmp.ne.s32.totalorder %s123, %s124
      %p133 = scmp.eq.s32.totalorder %s24, 0
      %p134 = por %p132, %p133
      %p135 = scmp.ne.s32.totalorder %s123, %s124
      %p136 = scmp.eq.s32.totalorder %s25, 1
      %p137 = por %p135, %p136
      %p139 = scmp.ne.s32.totalorder %s124, %s138
      %p140 = scmp.eq.s32.totalorder %s25, 0
      %p141 = por %p139, %p140
      %s143 = sadd.s32 %s142, 1
      %p146 = scmp.eq.s32.totalorder %s19, 1
      %p147 = scmp.ne.s32.totalorder %s142, %s144
      %p148 = scmp.eq.s32.totalorder %s19, 0
      %p149 = por %p147, %p148
      %p150 = scmp.ne.s32.totalorder %s142, %s144
      %p151 = scmp.eq.s32.totalorder %s24, 1
      %p152 = por %p150, %p151
      %p153 = scmp.ne.s32.totalorder %s144, %s145
      %p154 = scmp.eq.s32.totalorder %s24, 0
      %p155 = por %p153, %p154
      %p156 = scmp.ne.s32.totalorder %s144, %s145
      %p157 = scmp.eq.s32.totalorder %s25, 1
      %p158 = por %p156, %p157
      %p160 = scmp.ne.s32.totalorder %s145, %s159
      %p161 = scmp.eq.s32.totalorder %s25, 0
      %p162 = por %p160, %p161
      %s164 = sadd.s32 %s163, 1
      %p167 = scmp.eq.s32.totalorder %s19, 1
      %p168 = scmp.ne.s32.totalorder %s163, %s165
      %p169 = scmp.eq.s32.totalorder %s19, 0
      %p170 = por %p168, %p169
      %p171 = scmp.ne.s32.totalorder %s163, %s165
      %p172 = scmp.eq.s32.totalorder %s24, 1
      %p173 = por %p171, %p172
      %p174 = scmp.ne.s32.totalorder %s165, %s166
      %p175 = scmp.eq.s32.totalorder %s24, 0
      %p176 = por %p174, %p175
      %p177 = scmp.ne.s32.totalorder %s165, %s166
      %p178 = scmp.eq.s32.totalorder %s25, 1
      %p179 = por %p177, %p178
      %p181 = scmp.ne.s32.totalorder %s166, %s180
      %p182 = scmp.eq.s32.totalorder %s25, 0
      %p183 = por %p181, %p182
      %s185 = sadd.s32 %s184, 1
      %p188 = scmp.eq.s32.totalorder %s19, 1
      %p189 = scmp.ne.s32.totalorder %s184, %s186
      %p190 = scmp.eq.s32.totalorder %s19, 0
      %p191 = por %p189, %p190
      %p192 = scmp.ne.s32.totalorder %s184, %s186
      %p193 = scmp.eq.s32.totalorder %s24, 1
      %p194 = por %p192, %p193
      %p195 = scmp.ne.s32.totalorder %s186, %s187
      %p196 = scmp.eq.s32.totalorder %s24, 0
      %p197 = por %p195, %p196
      %p198 = scmp.ne.s32.totalorder %s186, %s187
      %p199 = scmp.eq.s32.totalorder %s25, 1
      %p200 = por %p198, %p199
      %p202 = scmp.ne.s32.totalorder %s187, %s201
      %p203 = scmp.eq.s32.totalorder %s25, 0
      %p204 = por %p202, %p203
      %s205 = ssub.s32 %s19, %s26
      %p206 = scmp.eq.s32.totalorder %s205, 0
      %s208 = sadd.s32 %s207, 1
      %s209 = scalar_select %p206, %s207, %s208
      %p212 = pneg %p206
      %p213 = scmp.eq.s32.totalorder %s19, 1
      %p214 = por %p212, %p213
      %p215 = scmp.ne.s32.totalorder %s207, %s210
      %p216 = scmp.eq.s32.totalorder %s19, 0
      %p217 = por %p215, %p216
      %p218 = scmp.ne.s32.totalorder %s207, %s210
      %p219 = scmp.eq.s32.totalorder %s24, 1
      %p220 = por %p218, %p219
      %p221 = scmp.ne.s32.totalorder %s210, %s211
      %p222 = scmp.eq.s32.totalorder %s24, 0
      %p223 = por %p221, %p222
      %p224 = scmp.ne.s32.totalorder %s210, %s211
      %p225 = scmp.eq.s32.totalorder %s25, 1
      %p226 = por %p224, %p225
      %p228 = scmp.ne.s32.totalorder %s211, %s227
      %p229 = scmp.eq.s32.totalorder %s25, 0
      %p230 = por %p228, %p229
      %p231 = scmp.le.s32.totalorder 1, %s19
      %p232 = scmp.lt.s32.totalorder %s19, 3
      %p233 = pnand %p231, %p232
      %p234 = pneg %p233
      // Predicated region
      $region9: #{tpu_custom_call.1} parent=5 // pred_check
        _
      $region10: #{tpu_custom_call.1} parent=5 // pred_check_branch
        %236 = sbr.rel (%p233) target = $region12
      $region11: #{tpu_custom_call.1} parent=5 // pred_region
        %s237 = ssub.s32 %s19, 1
        // Predicated region
        $region13: #{tpu_custom_call.1} parent=11 // pred_check
          %p238 = pneg %p40
        $region14: #{tpu_custom_call.1} parent=11 // pred_check_branch
          %240 = sbr.rel (%p238) target = $region16
        $region15: #{tpu_custom_call.1} parent=11 // pred_region
          %s242 = ssub.s32 64, 64
          %243 = vsyncadd [#allocation4], %s242
          %s245 = sshll.u32 [#allocation3], 4
          %s246 = int_to_ptr.vmem [resolvable:$true] %s245
          %248 = dma.hbm_to_vmem [thread:$0]  %s0, 64, %s246, [#allocation4]
        $region16: #{tpu_custom_call.1} parent=11 // pred_fallthru
          _
        // Predicated region
        $region17: #{tpu_custom_call.1} parent=11 // pred_check
          %p249 = pneg %p113
        $region18: #{tpu_custom_call.1} parent=11 // pred_check_branch
          %251 = sbr.rel (%p249) target = $region20
        $region19: #{tpu_custom_call.1} parent=11 // pred_region
          %s253 = ssub.s32 2048, 2048
          %254 = vsyncadd [#allocation7], %s253
          %s255 = sshll.u32 [#allocation6], 4
          %s256 = int_to_ptr.vmem [resolvable:$true] %s255
          %261 = dma.hbm_to_vmem [thread:$0]  %s3, 2048, %s256, [#allocation7], 64, 64, 4
        $region20: #{tpu_custom_call.1} parent=11 // pred_fallthru
          _
        // Predicated region
        $region21: #{tpu_custom_call.1} parent=11 // pred_check
          %p262 = pneg %p134
        $region22: #{tpu_custom_call.1} parent=11 // pred_check_branch
          %264 = sbr.rel (%p262) target = $region24
        $region23: #{tpu_custom_call.1} parent=11 // pred_region
          %s266 = ssub.s32 6144, 6144
          %267 = vsyncadd [#allocation7], %s266
          %s268 = sshll.u32 [#allocation8], 4
          %s269 = int_to_ptr.vmem [resolvable:$true] %s268
          %274 = dma.hbm_to_vmem [thread:$0]  %s4, 6144, %s269, [#allocation7], 64, 64, 4
        $region24: #{tpu_custom_call.1} parent=11 // pred_fallthru
          _
        // Predicated region
        $region25: #{tpu_custom_call.1} parent=11 // pred_check
          %p275 = pneg %p155
        $region26: #{tpu_custom_call.1} parent=11 // pred_check_branch
          %277 = sbr.rel (%p275) target = $region28
        $region27: #{tpu_custom_call.1} parent=11 // pred_region
          _
        $region28: #{tpu_custom_call.1} parent=11 // pred_fallthru
          _
      $region12: #{tpu_custom_call.1} parent=5 // pred_fallthru
        _
      %p278 = scmp.lt.s32.totalorder %s19, 2
      // Predicated region
      $region29: #{tpu_custom_call.1} parent=5 // pred_check
        %p279 = pneg %p278
      $region30: #{tpu_custom_call.1} parent=5 // pred_check_branch
        %281 = sbr.rel (%p279) target = $region32
      $region31: #{tpu_custom_call.1} parent=5 // pred_region
        // Predicated region
        $region33: #{tpu_custom_call.1} parent=31 // pred_check
          %p282 = pneg %p60
        $region34: #{tpu_custom_call.1} parent=31 // pred_check_branch
          %284 = sbr.rel (%p282) target = $region36
        $region35: #{tpu_custom_call.1} parent=31 // pred_region
          %p285 = scmp.lt.s32.totalorder %s19, 1
          %s286 = scalar_select %p285, %s19, 1
          %s287 = smul.addr %s286, 4
          %s288 = scalar_lea.vmem %s1, %s287
        $region36: #{tpu_custom_call.1} parent=31 // pred_fallthru
          _
        // Predicated region
        $region37: #{tpu_custom_call.1} parent=31 // pred_check
          %p289 = pneg %p86
        $region38: #{tpu_custom_call.1} parent=31 // pred_check_branch
          %291 = sbr.rel (%p289) target = $region40
        $region39: #{tpu_custom_call.1} parent=31 // pred_region
          %p292 = scmp.lt.s32.totalorder %s19, 1
          %s293 = scalar_select %p292, %s19, 1
          %s294 = smul.addr %s293, 8
          %s295 = scalar_lea.vmem %s2, %s294
        $region40: #{tpu_custom_call.1} parent=31 // pred_fallthru
          _
      $region32: #{tpu_custom_call.1} parent=5 // pred_fallthru
        _
      %p296 = scmp.le.s32.totalorder 1, %s19
      %p297 = scmp.lt.s32.totalorder %s19, 3
      %p298 = pnand %p296, %p297
      %p299 = pneg %p298
      // Predicated region
      $region41: #{tpu_custom_call.1} parent=5 // pred_check
        _
      $region42: #{tpu_custom_call.1} parent=5 // pred_check_branch
        %301 = sbr.rel (%p298) target = $region44
      $region43: #{tpu_custom_call.1} parent=5 // pred_region
        %s302 = ssub.s32 %s19, 1
        // Predicated region
        $region45: #{tpu_custom_call.1} parent=43 // pred_check
          %p303 = pneg %p40
        $region46: #{tpu_custom_call.1} parent=43 // pred_check_branch
          %305 = sbr.rel (%p303) target = $region48
        $region47: #{tpu_custom_call.1} parent=43 // pred_region
          %306 = dma.done [#allocation4], 64
        $region48: #{tpu_custom_call.1} parent=43 // pred_fallthru
          _
        // Predicated region
        $region49: #{tpu_custom_call.1} parent=43 // pred_check
          %p307 = pneg %p113
        $region50: #{tpu_custom_call.1} parent=43 // pred_check_branch
          %309 = sbr.rel (%p307) target = $region52
        $region51: #{tpu_custom_call.1} parent=43 // pred_region
          %310 = dma.done [#allocation7], 2048
        $region52: #{tpu_custom_call.1} parent=43 // pred_fallthru
          _
        // Predicated region
        $region53: #{tpu_custom_call.1} parent=43 // pred_check
          %p311 = pneg %p134
        $region54: #{tpu_custom_call.1} parent=43 // pred_check_branch
          %313 = sbr.rel (%p311) target = $region56
        $region55: #{tpu_custom_call.1} parent=43 // pred_region
          %314 = dma.done [#allocation7], 6144
        $region56: #{tpu_custom_call.1} parent=43 // pred_fallthru
          _
        %p315 = pneg %p40
        %p316 = pneg %p37
        %p317 = scmp.lt.s32.totalorder %s24, 1
        %s318 = scalar_select %p317, %s24, 1
        %s319 = smul.addr %s318, 4
        %s320 = scalar_lea.vmem %s1, %s319
        %p321 = pneg %p66
        %p322 = pneg %p63
        %p323 = scmp.lt.s32.totalorder %s24, 1
        %s324 = scalar_select %p323, %s24, 1
        %s325 = smul.addr %s324, 8
        %s326 = scalar_lea.vmem %s2, %s325
        %p327 = pneg %p92
        %p328 = pneg %p89
        %p329 = pneg %p113
        %p330 = pneg %p110
        %p331 = pneg %p134
        %p332 = pneg %p131
        %p333 = pneg %p155
        %p334 = pneg %p152
        %p335 = pneg %p176
        %p336 = pneg %p173
        %p337 = pneg %p197
        %p338 = pneg %p194
        %p339 = pneg %p223
        %p340 = pneg %p220
        %s341 = sand.u32 %s24, 1
        %s342 = scalar_lea.sflag [#allocation5], %s341
        %s343 = sand.u32 %s210, 1
        %s344 = smul.addr %s343, 8
        %s345 = scalar_lea.vmem [#allocation12], %s344
        %p346 = scmp.lt.s32.totalorder %s24, 1
        %s347 = scalar_select %p346, %s24, 1
        %s348 = smul.addr %s347, 4
        %s349 = scalar_lea.vmem %s1, %s348
        %p350 = scmp.lt.s32.totalorder %s24, 1
        %s351 = scalar_select %p350, %s24, 1
        %s352 = smul.addr %s351, 8
        %s353 = scalar_lea.vmem %s2, %s352
        %v355 = vld [vmem:[%s5] sm:$0x1]
        %v356 = vld [vmem:[%s5 + $0x1] sm:$0x1]
        %v357 = vld [vmem:[%s5 + $0x2] sm:$0x1]
        %v358 = vld [vmem:[%s5 + $0x3] sm:$0x1]
        %v359 = vld [vmem:[%s5 + $0x4] sm:$0x1]
        %v360 = vld [vmem:[%s5 + $0x5] sm:$0x1]
        %v361 = vld [vmem:[%s5 + $0x6] sm:$0x1]
        %p362 = scmp.eq.s32.totalorder %s24, 0
        // Predicated region
        $region57: #{tpu_custom_call.1} parent=43 // pred_check
          %p363 = pneg %p362
        $region58: #{tpu_custom_call.1} parent=43 // pred_check_branch
          %365 = sbr.rel (%p363) target = $region60
        $region59: #{tpu_custom_call.1} parent=43 // pred_region
          %v366 = vld [vmem:[#allocation3] sm:$0xf]
          %v367 = vld [vmem:[#allocation6] sm:$0xf]
          %v368 = vld [vmem:[#allocation6 + $0x4] sm:$0xf]
          %v369 = vld [vmem:[#allocation6 + $0x8] sm:$0xf]
          %v370 = vld [vmem:[#allocation6 + $0xc] sm:$0xf]
          %v371 = vld [vmem:[#allocation6 + $0x10] sm:$0xf]
          %v372 = vld [vmem:[#allocation6 + $0x14] sm:$0xf]
          %v373 = vld [vmem:[#allocation6 + $0x18] sm:$0xf]
          %v374 = vld [vmem:[#allocation6 + $0x1c] sm:$0xf]
          %v375 = vld [vmem:[#allocation6 + $0x20] sm:$0xf]
          %v376 = vld [vmem:[#allocation6 + $0x24] sm:$0xf]
          %v377 = vld [vmem:[#allocation6 + $0x28] sm:$0xf]
          %v378 = vld [vmem:[#allocation6 + $0x2c] sm:$0xf]
          %v379 = vld [vmem:[#allocation6 + $0x30] sm:$0xf]
          %v380 = vld [vmem:[#allocation6 + $0x34] sm:$0xf]
          %v381 = vld [vmem:[#allocation6 + $0x38] sm:$0xf]
          %v382 = vld [vmem:[#allocation6 + $0x3c] sm:$0xf]
          %v383 = vlaneseq
          %v384 = vshrl.u32 %v383, 7
          %v385 = vsub.s32 0, %v384
          %v386 = vrot.slane %v355, %v385
          %v403 = vunpack.c.l.b16 %v367
          %v404 = vunpack.c.l.b16 %v368
          %v405 = vunpack.c.l.b16 %v369
          %v406 = vunpack.c.l.b16 %v370
          %v407 = vunpack.c.l.b16 %v371
          %v408 = vunpack.c.l.b16 %v372
          %v409 = vunpack.c.l.b16 %v373
          %v410 = vunpack.c.l.b16 %v374
          %v411 = vunpack.c.l.b16 %v375
          %v412 = vunpack.c.l.b16 %v376
          %v413 = vunpack.c.l.b16 %v377
          %v414 = vunpack.c.l.b16 %v378
          %v415 = vunpack.c.l.b16 %v379
          %v416 = vunpack.c.l.b16 %v380
          %v417 = vunpack.c.l.b16 %v381
          %v418 = vunpack.c.l.b16 %v382
          %v419 = vpack.c.b16 %v404, %v403
          %v420 = vpack.c.b16 %v406, %v405
          %v421 = vpack.c.b16 %v408, %v407
          %v422 = vpack.c.b16 %v410, %v409
          %v423 = vpack.c.b16 %v412, %v411
          %v424 = vpack.c.b16 %v414, %v413
          %v425 = vpack.c.b16 %v416, %v415
          %v426 = vpack.c.b16 %v418, %v417
          %435 = vmatprep.subr.bf16.mxu0 0
          %436 = vmatpush1.bf16.msra.mxu0 %v426
          %437 = vmatprep.subr.bf16.mxu0 0
          %438 = vmatpush1.bf16.msra.mxu0 %v425
          %439 = vmatprep.subr.bf16.mxu0 0
          %440 = vmatpush1.bf16.msra.mxu0 %v424
          %441 = vmatprep.subr.bf16.mxu0 0
          %442 = vmatpush1.bf16.msra.mxu0 %v423
          %443 = vmatprep.subr.bf16.mxu0 0
          %444 = vmatpush1.bf16.msra.mxu0 %v422
          %445 = vmatprep.subr.bf16.mxu0 0
          %446 = vmatpush1.bf16.msra.mxu0 %v421
          %447 = vmatprep.subr.bf16.mxu0 0
          %448 = vmatpush1.bf16.msra.mxu0 %v420
          %449 = vmatprep.subr.bf16.mxu0 0
          %450 = vmatpush1.bf16.msra.mxu0 %v419
          %451 = vmatprep.subr.bf16.mxu0 0
          %452 = vmatpush2.bf16.msra.mxu0 0
          %453 = vmatprep.subr.bf16.mxu0 0
          %454 = vmatpush2.bf16.msra.mxu0 0
          %455 = vmatprep.subr.bf16.mxu0 0
          %456 = vmatpush2.bf16.msra.mxu0 0
          %457 = vmatprep.subr.bf16.mxu0 0
          %458 = vmatpush2.bf16.msra.mxu0 0
          %459 = vmatprep.subr.bf16.mxu0 0
          %460 = vmatpush2.bf16.msra.mxu0 0
          %461 = vmatprep.subr.bf16.mxu0 0
          %462 = vmatpush2.bf16.msra.mxu0 0
          %463 = vmatprep.subr.bf16.mxu0 0
          %464 = vmatpush2.bf16.msra.mxu0 0
          %465 = vmatprep.subr.bf16.mxu0 0
          %466 = vmatpush2.bf16.msra.mxu0 0
          %467 = vmatprep.mubr.bf16.mxu0 0
          %468 = vmatmul.mubr.bf16.gmra.mxu0 %v366
          %v469 = vpop.f32.mrf.mxu0
          %v470 = vadd.f32 %v386, %v469
          %v471 = vpop.f32.mrf.mxu0
          %v472 = vpop.f32.mrf.mxu0
          %v473 = vpop.f32.mrf.mxu0
          %474 = vdwg.mxu0
          %v475 = vmax.f32 %v470, 0.0
          %v476 = vld [vmem:[#allocation8] sm:$0xf]
          %v477 = vld [vmem:[#allocation8 + $0x4] sm:$0xf]
          %v478 = vld [vmem:[#allocation8 + $0x8] sm:$0xf]
          %v479 = vld [vmem:[#allocation8 + $0xc] sm:$0xf]
          %v480 = vld [vmem:[#allocation8 + $0x10] sm:$0xf]
          %v481 = vld [vmem:[#allocation8 + $0x14] sm:$0xf]
          %v482 = vld [vmem:[#allocation8 + $0x18] sm:$0xf]
          %v483 = vld [vmem:[#allocation8 + $0x1c] sm:$0xf]
          %v484 = vld [vmem:[#allocation8 + $0x20] sm:$0xf]
          %v485 = vld [vmem:[#allocation8 + $0x24] sm:$0xf]
          %v486 = vld [vmem:[#allocation8 + $0x28] sm:$0xf]
          %v487 = vld [vmem:[#allocation8 + $0x2c] sm:$0xf]
          %v488 = vld [vmem:[#allocation8 + $0x30] sm:$0xf]
          %v489 = vld [vmem:[#allocation8 + $0x34] sm:$0xf]
          %v490 = vld [vmem:[#allocation8 + $0x38] sm:$0xf]
          %v491 = vld [vmem:[#allocation8 + $0x3c] sm:$0xf]
          %v492 = vpack.c.bf16 %v475, %v475
          %v493 = vlaneseq
          %v494 = vshrl.u32 %v493, 7
          %v495 = vsub.s32 0, %v494
          %v496 = vrot.slane %v356, %v495
          %v513 = vunpack.c.l.b16 %v476
          %v514 = vunpack.c.l.b16 %v477
          %v515 = vunpack.c.l.b16 %v478
          %v516 = vunpack.c.l.b16 %v479
          %v517 = vunpack.c.l.b16 %v480
          %v518 = vunpack.c.l.b16 %v481
          %v519 = vunpack.c.l.b16 %v482
          %v520 = vunpack.c.l.b16 %v483
          %v521 = vunpack.c.l.b16 %v484
          %v522 = vunpack.c.l.b16 %v485
          %v523 = vunpack.c.l.b16 %v486
          %v524 = vunpack.c.l.b16 %v487
          %v525 = vunpack.c.l.b16 %v488
          %v526 = vunpack.c.l.b16 %v489
          %v527 = vunpack.c.l.b16 %v490
          %v528 = vunpack.c.l.b16 %v491
          %v529 = vpack.c.b16 %v514, %v513
          %v530 = vpack.c.b16 %v516, %v515
          %v531 = vpack.c.b16 %v518, %v517
          %v532 = vpack.c.b16 %v520, %v519
          %v533 = vpack.c.b16 %v522, %v521
          %v534 = vpack.c.b16 %v524, %v523
          %v535 = vpack.c.b16 %v526, %v525
          %v536 = vpack.c.b16 %v528, %v527
          %545 = vmatprep.subr.bf16.mxu0 0
          %546 = vmatpush1.bf16.msra.mxu0 %v536
          %547 = vmatprep.subr.bf16.mxu0 0
          %548 = vmatpush1.bf16.msra.mxu0 %v535
          %549 = vmatprep.subr.bf16.mxu0 0
          %550 = vmatpush1.bf16.msra.mxu0 %v534
          %551 = vmatprep.subr.bf16.mxu0 0
          %552 = vmatpush1.bf16.msra.mxu0 %v533
          %553 = vmatprep.subr.bf16.mxu0 0
          %554 = vmatpush1.bf16.msra.mxu0 %v532
          %555 = vmatprep.subr.bf16.mxu0 0
          %556 = vmatpush1.bf16.msra.mxu0 %v531
          %557 = vmatprep.subr.bf16.mxu0 0
          %558 = vmatpush1.bf16.msra.mxu0 %v530
          %559 = vmatprep.subr.bf16.mxu0 0
          %560 = vmatpush1.bf16.msra.mxu0 %v529
          %561 = vmatprep.subr.bf16.mxu0 0
          %562 = vmatpush2.bf16.msra.mxu0 0
          %563 = vmatprep.subr.bf16.mxu0 0
          %564 = vmatpush2.bf16.msra.mxu0 0
          %565 = vmatprep.subr.bf16.mxu0 0
          %566 = vmatpush2.bf16.msra.mxu0 0
          %567 = vmatprep.subr.bf16.mxu0 0
          %568 = vmatpush2.bf16.msra.mxu0 0
          %569 = vmatprep.subr.bf16.mxu0 0
          %570 = vmatpush2.bf16.msra.mxu0 0
          %571 = vmatprep.subr.bf16.mxu0 0
          %572 = vmatpush2.bf16.msra.mxu0 0
          %573 = vmatprep.subr.bf16.mxu0 0
          %574 = vmatpush2.bf16.msra.mxu0 0
          %575 = vmatprep.subr.bf16.mxu0 0
          %576 = vmatpush2.bf16.msra.mxu0 0
          %577 = vmatprep.mubr.bf16.mxu0 0
          %578 = vmatmul.mubr.bf16.gmra.mxu0 %v492
          %v579 = vpop.f32.mrf.mxu0
          %v580 = vadd.f32 %v496, %v579
          %v581 = vpop.f32.mrf.mxu0
          %v582 = vpop.f32.mrf.mxu0
          %v583 = vpop.f32.mrf.mxu0
          %584 = vdwg.mxu0
          %v585 = vmax.f32 %v580, 0.0
          %586 = vst [vmem:[#allocation9] sm:$0xff] %v585
          %v587 = vpack.c.bf16 %v585, %v585
          %588 = vst [vmem:[#allocation2] sm:$0xf] %v587
          %s589 = scalar_lea.vmem [#allocation8], 128
          %v590 = vld [vmem:[%s589] sm:$0xf]
          %v591 = vld [vmem:[%s589 + $0x4] sm:$0xf]
          %v592 = vld [vmem:[%s589 + $0x8] sm:$0xf]
          %v593 = vld [vmem:[%s589 + $0xc] sm:$0xf]
          %v594 = vld [vmem:[%s589 + $0x10] sm:$0xf]
          %v595 = vld [vmem:[%s589 + $0x14] sm:$0xf]
          %v596 = vld [vmem:[%s589 + $0x18] sm:$0xf]
          %v597 = vld [vmem:[%s589 + $0x1c] sm:$0xf]
          %v598 = vld [vmem:[%s589 + $0x20] sm:$0xf]
          %v599 = vld [vmem:[%s589 + $0x24] sm:$0xf]
          %v600 = vld [vmem:[%s589 + $0x28] sm:$0xf]
          %v601 = vld [vmem:[%s589 + $0x2c] sm:$0xf]
          %v602 = vld [vmem:[%s589 + $0x30] sm:$0xf]
          %v603 = vld [vmem:[%s589 + $0x34] sm:$0xf]
          %v604 = vld [vmem:[%s589 + $0x38] sm:$0xf]
          %v605 = vld [vmem:[%s589 + $0x3c] sm:$0xf]
          %v606 = vlaneseq
          %v607 = vshrl.u32 %v606, 7
          %v608 = vsub.s32 0, %v607
          %v609 = vrot.slane %v359, %v608
          %v626 = vunpack.c.l.b16 %v590
          %v627 = vunpack.c.l.b16 %v591
          %v628 = vunpack.c.l.b16 %v592
          %v629 = vunpack.c.l.b16 %v593
          %v630 = vunpack.c.l.b16 %v594
          %v631 = vunpack.c.l.b16 %v595
          %v632 = vunpack.c.l.b16 %v596
          %v633 = vunpack.c.l.b16 %v597
          %v634 = vunpack.c.l.b16 %v598
          %v635 = vunpack.c.l.b16 %v599
          %v636 = vunpack.c.l.b16 %v600
          %v637 = vunpack.c.l.b16 %v601
          %v638 = vunpack.c.l.b16 %v602
          %v639 = vunpack.c.l.b16 %v603
          %v640 = vunpack.c.l.b16 %v604
          %v641 = vunpack.c.l.b16 %v605
          %v642 = vpack.c.b16 %v627, %v626
          %v643 = vpack.c.b16 %v629, %v628
          %v644 = vpack.c.b16 %v631, %v630
          %v645 = vpack.c.b16 %v633, %v632
          %v646 = vpack.c.b16 %v635, %v634
          %v647 = vpack.c.b16 %v637, %v636
          %v648 = vpack.c.b16 %v639, %v638
          %v649 = vpack.c.b16 %v641, %v640
          %658 = vmatprep.subr.bf16.mxu0 0
          %659 = vmatpush1.bf16.msra.mxu0 %v649
          %660 = vmatprep.subr.bf16.mxu0 0
          %661 = vmatpush1.bf16.msra.mxu0 %v648
          %662 = vmatprep.subr.bf16.mxu0 0
          %663 = vmatpush1.bf16.msra.mxu0 %v647
          %664 = vmatprep.subr.bf16.mxu0 0
          %665 = vmatpush1.bf16.msra.mxu0 %v646
          %666 = vmatprep.subr.bf16.mxu0 0
          %667 = vmatpush1.bf16.msra.mxu0 %v645
          %668 = vmatprep.subr.bf16.mxu0 0
          %669 = vmatpush1.bf16.msra.mxu0 %v644
          %670 = vmatprep.subr.bf16.mxu0 0
          %671 = vmatpush1.bf16.msra.mxu0 %v643
          %672 = vmatprep.subr.bf16.mxu0 0
          %673 = vmatpush1.bf16.msra.mxu0 %v642
          %674 = vmatprep.subr.bf16.mxu0 0
          %675 = vmatpush2.bf16.msra.mxu0 0
          %676 = vmatprep.subr.bf16.mxu0 0
          %677 = vmatpush2.bf16.msra.mxu0 0
          %678 = vmatprep.subr.bf16.mxu0 0
          %679 = vmatpush2.bf16.msra.mxu0 0
          %680 = vmatprep.subr.bf16.mxu0 0
          %681 = vmatpush2.bf16.msra.mxu0 0
          %682 = vmatprep.subr.bf16.mxu0 0
          %683 = vmatpush2.bf16.msra.mxu0 0
          %684 = vmatprep.subr.bf16.mxu0 0
          %685 = vmatpush2.bf16.msra.mxu0 0
          %686 = vmatprep.subr.bf16.mxu0 0
          %687 = vmatpush2.bf16.msra.mxu0 0
          %688 = vmatprep.subr.bf16.mxu0 0
          %689 = vmatpush2.bf16.msra.mxu0 0
          %690 = vmatprep.mubr.bf16.mxu0 0
          %691 = vmatmul.mubr.bf16.gmra.mxu0 %v587
          %v692 = vpop.f32.mrf.mxu0
          %v693 = vadd.f32 %v609, %v692
          %v694 = vpop.f32.mrf.mxu0
          %v695 = vpop.f32.mrf.mxu0
          %v696 = vpop.f32.mrf.mxu0
          %697 = vdwg.mxu0
          %698 = vst [vmem:[#allocation10] sm:$0xff] %v693
        $region60: #{tpu_custom_call.1} parent=43 // pred_fallthru
          _
        %v699 = vld [vmem:[%s349] sm:$0xf]
        %s700 = scalar_lea.vmem [#allocation6], 64
        %v701 = vld [vmem:[%s700] sm:$0xf]
        %v702 = vld [vmem:[%s700 + $0x4] sm:$0xf]
        %v703 = vld [vmem:[%s700 + $0x8] sm:$0xf]
        %v704 = vld [vmem:[%s700 + $0xc] sm:$0xf]
        %v705 = vld [vmem:[%s700 + $0x10] sm:$0xf]
        %v706 = vld [vmem:[%s700 + $0x14] sm:$0xf]
        %v707 = vld [vmem:[%s700 + $0x18] sm:$0xf]
        %v708 = vld [vmem:[%s700 + $0x1c] sm:$0xf]
        %v709 = vld [vmem:[%s700 + $0x20] sm:$0xf]
        %v710 = vld [vmem:[%s700 + $0x24] sm:$0xf]
        %v711 = vld [vmem:[%s700 + $0x28] sm:$0xf]
        %v712 = vld [vmem:[%s700 + $0x2c] sm:$0xf]
        %v713 = vld [vmem:[%s700 + $0x30] sm:$0xf]
        %v714 = vld [vmem:[%s700 + $0x34] sm:$0xf]
        %v715 = vld [vmem:[%s700 + $0x38] sm:$0xf]
        %v716 = vld [vmem:[%s700 + $0x3c] sm:$0xf]
        %v717 = vlaneseq
        %v718 = vshrl.u32 %v717, 7
        %v719 = vsub.s32 0, %v718
        %v720 = vrot.slane %v357, %v719
        %v737 = vunpack.c.l.b16 %v701
        %v738 = vunpack.c.l.b16 %v702
        %v739 = vunpack.c.l.b16 %v703
        %v740 = vunpack.c.l.b16 %v704
        %v741 = vunpack.c.l.b16 %v705
        %v742 = vunpack.c.l.b16 %v706
        %v743 = vunpack.c.l.b16 %v707
        %v744 = vunpack.c.l.b16 %v708
        %v745 = vunpack.c.l.b16 %v709
        %v746 = vunpack.c.l.b16 %v710
        %v747 = vunpack.c.l.b16 %v711
        %v748 = vunpack.c.l.b16 %v712
        %v749 = vunpack.c.l.b16 %v713
        %v750 = vunpack.c.l.b16 %v714
        %v751 = vunpack.c.l.b16 %v715
        %v752 = vunpack.c.l.b16 %v716
        %v753 = vpack.c.b16 %v738, %v737
        %v754 = vpack.c.b16 %v740, %v739
        %v755 = vpack.c.b16 %v742, %v741
        %v756 = vpack.c.b16 %v744, %v743
        %v757 = vpack.c.b16 %v746, %v745
        %v758 = vpack.c.b16 %v748, %v747
        %v759 = vpack.c.b16 %v750, %v749
        %v760 = vpack.c.b16 %v752, %v751
        %769 = vmatprep.subr.bf16.mxu0 0
        %770 = vmatpush1.bf16.msra.mxu0 %v760
        %771 = vmatprep.subr.bf16.mxu0 0
        %772 = vmatpush1.bf16.msra.mxu0 %v759
        %773 = vmatprep.subr.bf16.mxu0 0
        %774 = vmatpush1.bf16.msra.mxu0 %v758
        %775 = vmatprep.subr.bf16.mxu0 0
        %776 = vmatpush1.bf16.msra.mxu0 %v757
        %777 = vmatprep.subr.bf16.mxu0 0
        %778 = vmatpush1.bf16.msra.mxu0 %v756
        %779 = vmatprep.subr.bf16.mxu0 0
        %780 = vmatpush1.bf16.msra.mxu0 %v755
        %781 = vmatprep.subr.bf16.mxu0 0
        %782 = vmatpush1.bf16.msra.mxu0 %v754
        %783 = vmatprep.subr.bf16.mxu0 0
        %784 = vmatpush1.bf16.msra.mxu0 %v753
        %785 = vmatprep.subr.bf16.mxu0 0
        %786 = vmatpush2.bf16.msra.mxu0 0
        %787 = vmatprep.subr.bf16.mxu0 0
        %788 = vmatpush2.bf16.msra.mxu0 0
        %789 = vmatprep.subr.bf16.mxu0 0
        %790 = vmatpush2.bf16.msra.mxu0 0
        %791 = vmatprep.subr.bf16.mxu0 0
        %792 = vmatpush2.bf16.msra.mxu0 0
        %793 = vmatprep.subr.bf16.mxu0 0
        %794 = vmatpush2.bf16.msra.mxu0 0
        %795 = vmatprep.subr.bf16.mxu0 0
        %796 = vmatpush2.bf16.msra.mxu0 0
        %797 = vmatprep.subr.bf16.mxu0 0
        %798 = vmatpush2.bf16.msra.mxu0 0
        %799 = vmatprep.subr.bf16.mxu0 0
        %800 = vmatpush2.bf16.msra.mxu0 0
        %801 = vmatprep.mubr.bf16.mxu0 0
        %802 = vmatmul.mubr.bf16.gmra.mxu0 %v699
        %v803 = vpop.f32.mrf.mxu0
        %v804 = vadd.f32 %v720, %v803
        %v805 = vpop.f32.mrf.mxu0
        %v806 = vpop.f32.mrf.mxu0
        %v807 = vpop.f32.mrf.mxu0
        %808 = vdwg.mxu0
        %v809 = vmax.f32 %v804, 0.0
        %s810 = scalar_lea.vmem [#allocation8], 64
        %v811 = vld [vmem:[%s810] sm:$0xf]
        %v812 = vld [vmem:[%s810 + $0x4] sm:$0xf]
        %v813 = vld [vmem:[%s810 + $0x8] sm:$0xf]
        %v814 = vld [vmem:[%s810 + $0xc] sm:$0xf]
        %v815 = vld [vmem:[%s810 + $0x10] sm:$0xf]
        %v816 = vld [vmem:[%s810 + $0x14] sm:$0xf]
        %v817 = vld [vmem:[%s810 + $0x18] sm:$0xf]
        %v818 = vld [vmem:[%s810 + $0x1c] sm:$0xf]
        %v819 = vld [vmem:[%s810 + $0x20] sm:$0xf]
        %v820 = vld [vmem:[%s810 + $0x24] sm:$0xf]
        %v821 = vld [vmem:[%s810 + $0x28] sm:$0xf]
        %v822 = vld [vmem:[%s810 + $0x2c] sm:$0xf]
        %v823 = vld [vmem:[%s810 + $0x30] sm:$0xf]
        %v824 = vld [vmem:[%s810 + $0x34] sm:$0xf]
        %v825 = vld [vmem:[%s810 + $0x38] sm:$0xf]
        %v826 = vld [vmem:[%s810 + $0x3c] sm:$0xf]
        %v827 = vpack.c.bf16 %v809, %v809
        %v828 = vlaneseq
        %v829 = vshrl.u32 %v828, 7
        %v830 = vsub.s32 0, %v829
        %v831 = vrot.slane %v358, %v830
        %v848 = vunpack.c.l.b16 %v811
        %v849 = vunpack.c.l.b16 %v812
        %v850 = vunpack.c.l.b16 %v813
        %v851 = vunpack.c.l.b16 %v814
        %v852 = vunpack.c.l.b16 %v815
        %v853 = vunpack.c.l.b16 %v816
        %v854 = vunpack.c.l.b16 %v817
        %v855 = vunpack.c.l.b16 %v818
        %v856 = vunpack.c.l.b16 %v819
        %v857 = vunpack.c.l.b16 %v820
        %v858 = vunpack.c.l.b16 %v821
        %v859 = vunpack.c.l.b16 %v822
        %v860 = vunpack.c.l.b16 %v823
        %v861 = vunpack.c.l.b16 %v824
        %v862 = vunpack.c.l.b16 %v825
        %v863 = vunpack.c.l.b16 %v826
        %v864 = vpack.c.b16 %v849, %v848
        %v865 = vpack.c.b16 %v851, %v850
        %v866 = vpack.c.b16 %v853, %v852
        %v867 = vpack.c.b16 %v855, %v854
        %v868 = vpack.c.b16 %v857, %v856
        %v869 = vpack.c.b16 %v859, %v858
        %v870 = vpack.c.b16 %v861, %v860
        %v871 = vpack.c.b16 %v863, %v862
        %880 = vmatprep.subr.bf16.mxu0 0
        %881 = vmatpush1.bf16.msra.mxu0 %v871
        %882 = vmatprep.subr.bf16.mxu0 0
        %883 = vmatpush1.bf16.msra.mxu0 %v870
        %884 = vmatprep.subr.bf16.mxu0 0
        %885 = vmatpush1.bf16.msra.mxu0 %v869
        %886 = vmatprep.subr.bf16.mxu0 0
        %887 = vmatpush1.bf16.msra.mxu0 %v868
        %888 = vmatprep.subr.bf16.mxu0 0
        %889 = vmatpush1.bf16.msra.mxu0 %v867
        %890 = vmatprep.subr.bf16.mxu0 0
        %891 = vmatpush1.bf16.msra.mxu0 %v866
        %892 = vmatprep.subr.bf16.mxu0 0
        %893 = vmatpush1.bf16.msra.mxu0 %v865
        %894 = vmatprep.subr.bf16.mxu0 0
        %895 = vmatpush1.bf16.msra.mxu0 %v864
        %896 = vmatprep.subr.bf16.mxu0 0
        %897 = vmatpush2.bf16.msra.mxu0 0
        %898 = vmatprep.subr.bf16.mxu0 0
        %899 = vmatpush2.bf16.msra.mxu0 0
        %900 = vmatprep.subr.bf16.mxu0 0
        %901 = vmatpush2.bf16.msra.mxu0 0
        %902 = vmatprep.subr.bf16.mxu0 0
        %903 = vmatpush2.bf16.msra.mxu0 0
        %904 = vmatprep.subr.bf16.mxu0 0
        %905 = vmatpush2.bf16.msra.mxu0 0
        %906 = vmatprep.subr.bf16.mxu0 0
        %907 = vmatpush2.bf16.msra.mxu0 0
        %908 = vmatprep.subr.bf16.mxu0 0
        %909 = vmatpush2.bf16.msra.mxu0 0
        %910 = vmatprep.subr.bf16.mxu0 0
        %911 = vmatpush2.bf16.msra.mxu0 0
        %912 = vmatprep.mubr.bf16.mxu0 0
        %913 = vmatmul.mubr.bf16.gmra.mxu0 %v827
        %v914 = vpop.f32.mrf.mxu0
        %v915 = vadd.f32 %v831, %v914
        %v916 = vpop.f32.mrf.mxu0
        %v917 = vpop.f32.mrf.mxu0
        %v918 = vpop.f32.mrf.mxu0
        %919 = vdwg.mxu0
        %v920 = vmax.f32 %v915, 0.0
        %v921 = vld [vmem:[%s353] sm:$0xff]
        %v922 = vlaneseq
        %v923 = vand.u32 %v922, 127
        %924 = vset.pattern.permute.xlu0 0
        %925 = vperm.xlu0 %924, %v921
        %v926 = vpop.permute.xlu0 %925
        %vm927 = vcmp.eq.s32.totalorder %v926, %v923
        %v928 = vsel %vm927, 1.0, 0.0
        %v929 = vpack.c.bf16 %v928, %v928
        %930 = vset.pattern.permute.xlu0 1
        %931 = vperm.xlu0 %930, %v921
        %v932 = vpop.permute.xlu0 %931
        %vm933 = vcmp.eq.s32.totalorder %v932, %v923
        %v934 = vsel %vm933, 1.0, 0.0
        %v935 = vpack.c.bf16 %v934, %v934
        %v936 = vld [vmem:[#allocation2] sm:$0xf]
        %vm937 = vcmask 64512
        %v939 = vsel %vm937, %v929, 0
        %vm941 = vcmask 1043456
        %v943 = vsel %vm941, %v936, 0
        %945 = vmatprep.subr.bf16.mxu0 0
        %946 = vmatpush1.bf16.msra.mxu0 0
        %947 = vmatprep.subr.bf16.mxu0 0
        %948 = vmatpush1.bf16.msra.mxu0 0
        %949 = vmatprep.subr.bf16.mxu0 0
        %950 = vmatpush1.bf16.msra.mxu0 0
        %951 = vmatprep.subr.bf16.mxu0 0
        %952 = vmatpush1.bf16.msra.mxu0 0
        %953 = vmatprep.subr.bf16.mxu0 0
        %954 = vmatpush1.bf16.msra.mxu0 0
        %955 = vmatprep.subr.bf16.mxu0 0
        %956 = vmatpush1.bf16.msra.mxu0 0
        %957 = vmatprep.subr.bf16.mxu0 0
        %958 = vmatpush1.bf16.msra.mxu0 0
        %959 = vmatprep.subr.bf16.mxu0 0
        %960 = vmatpush1.bf16.msra.mxu0 %v943
        %961 = vmatprep.subr.bf16.mxu0 0
        %962 = vmatpush2.bf16.msra.mxu0 0
        %963 = vmatprep.subr.bf16.mxu0 0
        %964 = vmatpush2.bf16.msra.mxu0 0
        %965 = vmatprep.subr.bf16.mxu0 0
        %966 = vmatpush2.bf16.msra.mxu0 0
        %967 = vmatprep.subr.bf16.mxu0 0
        %968 = vmatpush2.bf16.msra.mxu0 0
        %969 = vmatprep.subr.bf16.mxu0 0
        %970 = vmatpush2.bf16.msra.mxu0 0
        %971 = vmatprep.subr.bf16.mxu0 0
        %972 = vmatpush2.bf16.msra.mxu0 0
        %973 = vmatprep.subr.bf16.mxu0 0
        %974 = vmatpush2.bf16.msra.mxu0 0
        %975 = vmatprep.subr.bf16.mxu0 0
        %976 = vmatpush2.bf16.msra.mxu0 0
        %977 = vmatprep.mubr.bf16.mxu0 0
        %978 = vmatmul.mubr.bf16.gmra.mxu0 %v939
        %v979 = vpop.f32.mrf.mxu0
        %v980 = vadd.f32 0.0, %v979
        %v981 = vpop.f32.mrf.mxu0
        %v982 = vpop.f32.mrf.mxu0
        %v983 = vpop.f32.mrf.mxu0
        %984 = vdwg.mxu0
        %v986 = vsel %vm937, %v935, 0
        %988 = vmatprep.subr.bf16.mxu0 0
        %989 = vmatpush1.bf16.msra.mxu0 0
        %990 = vmatprep.subr.bf16.mxu0 0
        %991 = vmatpush1.bf16.msra.mxu0 0
        %992 = vmatprep.subr.bf16.mxu0 0
        %993 = vmatpush1.bf16.msra.mxu0 0
        %994 = vmatprep.subr.bf16.mxu0 0
        %995 = vmatpush1.bf16.msra.mxu0 0
        %996 = vmatprep.subr.bf16.mxu0 0
        %997 = vmatpush1.bf16.msra.mxu0 0
        %998 = vmatprep.subr.bf16.mxu0 0
        %999 = vmatpush1.bf16.msra.mxu0 0
        %1000 = vmatprep.subr.bf16.mxu0 0
        %1001 = vmatpush1.bf16.msra.mxu0 0
        %1002 = vmatprep.subr.bf16.mxu0 0
        %1003 = vmatpush1.bf16.msra.mxu0 %v943
        %1004 = vmatprep.subr.bf16.mxu0 0
        %1005 = vmatpush2.bf16.msra.mxu0 0
        %1006 = vmatprep.subr.bf16.mxu0 0
        %1007 = vmatpush2.bf16.msra.mxu0 0
        %1008 = vmatprep.subr.bf16.mxu0 0
        %1009 = vmatpush2.bf16.msra.mxu0 0
        %1010 = vmatprep.subr.bf16.mxu0 0
        %1011 = vmatpush2.bf16.msra.mxu0 0
        %1012 = vmatprep.subr.bf16.mxu0 0
        %1013 = vmatpush2.bf16.msra.mxu0 0
        %1014 = vmatprep.subr.bf16.mxu0 0
        %1015 = vmatpush2.bf16.msra.mxu0 0
        %1016 = vmatprep.subr.bf16.mxu0 0
        %1017 = vmatpush2.bf16.msra.mxu0 0
        %1018 = vmatprep.subr.bf16.mxu0 0
        %1019 = vmatpush2.bf16.msra.mxu0 0
        %1020 = vmatprep.mubr.bf16.mxu0 0
        %1021 = vmatmul.mubr.bf16.gmra.mxu0 %v986
        %v1022 = vpop.f32.mrf.mxu0
        %v1023 = vadd.f32 0.0, %v1022
        %v1024 = vpop.f32.mrf.mxu0
        %v1025 = vpop.f32.mrf.mxu0
        %v1026 = vpop.f32.mrf.mxu0
        %1027 = vdwg.mxu0
        %s1028 = scalar_lea.vmem [#allocation8], 192
        %v1029 = vld [vmem:[%s1028] sm:$0xf]
        %v1030 = vld [vmem:[%s1028 + $0x4] sm:$0xf]
        %v1031 = vld [vmem:[%s1028 + $0x8] sm:$0xf]
        %v1032 = vld [vmem:[%s1028 + $0xc] sm:$0xf]
        %v1033 = vld [vmem:[%s1028 + $0x10] sm:$0xf]
        %v1034 = vld [vmem:[%s1028 + $0x14] sm:$0xf]
        %v1035 = vld [vmem:[%s1028 + $0x18] sm:$0xf]
        %v1036 = vld [vmem:[%s1028 + $0x1c] sm:$0xf]
        %v1037 = vld [vmem:[%s1028 + $0x20] sm:$0xf]
        %v1038 = vld [vmem:[%s1028 + $0x24] sm:$0xf]
        %v1039 = vld [vmem:[%s1028 + $0x28] sm:$0xf]
        %v1040 = vld [vmem:[%s1028 + $0x2c] sm:$0xf]
        %v1041 = vld [vmem:[%s1028 + $0x30] sm:$0xf]
        %v1042 = vld [vmem:[%s1028 + $0x34] sm:$0xf]
        %v1043 = vld [vmem:[%s1028 + $0x38] sm:$0xf]
        %v1044 = vld [vmem:[%s1028 + $0x3c] sm:$0xf]
        %v1045 = vpack.c.bf16 %v980, %v980
        %s1046 = scalar_lea.vmem [#allocation8], 256
        %v1047 = vld [vmem:[%s1046] sm:$0xf]
        %v1048 = vld [vmem:[%s1046 + $0x4] sm:$0xf]
        %v1049 = vld [vmem:[%s1046 + $0x8] sm:$0xf]
        %v1050 = vld [vmem:[%s1046 + $0xc] sm:$0xf]
        %v1051 = vld [vmem:[%s1046 + $0x10] sm:$0xf]
        %v1052 = vld [vmem:[%s1046 + $0x14] sm:$0xf]
        %v1053 = vld [vmem:[%s1046 + $0x18] sm:$0xf]
        %v1054 = vld [vmem:[%s1046 + $0x1c] sm:$0xf]
        %v1055 = vld [vmem:[%s1046 + $0x20] sm:$0xf]
        %v1056 = vld [vmem:[%s1046 + $0x24] sm:$0xf]
        %v1057 = vld [vmem:[%s1046 + $0x28] sm:$0xf]
        %v1058 = vld [vmem:[%s1046 + $0x2c] sm:$0xf]
        %v1059 = vld [vmem:[%s1046 + $0x30] sm:$0xf]
        %v1060 = vld [vmem:[%s1046 + $0x34] sm:$0xf]
        %v1061 = vld [vmem:[%s1046 + $0x38] sm:$0xf]
        %v1062 = vld [vmem:[%s1046 + $0x3c] sm:$0xf]
        %v1063 = vpack.c.bf16 %v1023, %v1023
        %v1080 = vunpack.c.l.b16 %v1047
        %v1081 = vunpack.c.l.b16 %v1048
        %v1082 = vunpack.c.l.b16 %v1049
        %v1083 = vunpack.c.l.b16 %v1050
        %v1084 = vunpack.c.l.b16 %v1051
        %v1085 = vunpack.c.l.b16 %v1052
        %v1086 = vunpack.c.l.b16 %v1053
        %v1087 = vunpack.c.l.b16 %v1054
        %v1088 = vunpack.c.l.b16 %v1055
        %v1089 = vunpack.c.l.b16 %v1056
        %v1090 = vunpack.c.l.b16 %v1057
        %v1091 = vunpack.c.l.b16 %v1058
        %v1092 = vunpack.c.l.b16 %v1059
        %v1093 = vunpack.c.l.b16 %v1060
        %v1094 = vunpack.c.l.b16 %v1061
        %v1095 = vunpack.c.l.b16 %v1062
        %v1096 = vpack.c.b16 %v1081, %v1080
        %v1097 = vpack.c.b16 %v1083, %v1082
        %v1098 = vpack.c.b16 %v1085, %v1084
        %v1099 = vpack.c.b16 %v1087, %v1086
        %v1100 = vpack.c.b16 %v1089, %v1088
        %v1101 = vpack.c.b16 %v1091, %v1090
        %v1102 = vpack.c.b16 %v1093, %v1092
        %v1103 = vpack.c.b16 %v1095, %v1094
        %1112 = vmatprep.subr.bf16.mxu0 0
        %1113 = vmatpush1.bf16.msra.mxu0 %v1103
        %1114 = vmatprep.subr.bf16.mxu0 0
        %1115 = vmatpush1.bf16.msra.mxu0 %v1102
        %1116 = vmatprep.subr.bf16.mxu0 0
        %1117 = vmatpush1.bf16.msra.mxu0 %v1101
        %1118 = vmatprep.subr.bf16.mxu0 0
        %1119 = vmatpush1.bf16.msra.mxu0 %v1100
        %1120 = vmatprep.subr.bf16.mxu0 0
        %1121 = vmatpush1.bf16.msra.mxu0 %v1099
        %1122 = vmatprep.subr.bf16.mxu0 0
        %1123 = vmatpush1.bf16.msra.mxu0 %v1098
        %1124 = vmatprep.subr.bf16.mxu0 0
        %1125 = vmatpush1.bf16.msra.mxu0 %v1097
        %1126 = vmatprep.subr.bf16.mxu0 0
        %1127 = vmatpush1.bf16.msra.mxu0 %v1096
        %1128 = vmatprep.subr.bf16.mxu0 0
        %1129 = vmatpush2.bf16.msra.mxu0 0
        %1130 = vmatprep.subr.bf16.mxu0 0
        %1131 = vmatpush2.bf16.msra.mxu0 0
        %1132 = vmatprep.subr.bf16.mxu0 0
        %1133 = vmatpush2.bf16.msra.mxu0 0
        %1134 = vmatprep.subr.bf16.mxu0 0
        %1135 = vmatpush2.bf16.msra.mxu0 0
        %1136 = vmatprep.subr.bf16.mxu0 0
        %1137 = vmatpush2.bf16.msra.mxu0 0
        %1138 = vmatprep.subr.bf16.mxu0 0
        %1139 = vmatpush2.bf16.msra.mxu0 0
        %1140 = vmatprep.subr.bf16.mxu0 0
        %1141 = vmatpush2.bf16.msra.mxu0 0
        %1142 = vmatprep.subr.bf16.mxu0 0
        %1143 = vmatpush2.bf16.msra.mxu0 0
        %1144 = vmatprep.mubr.bf16.mxu0 0
        %1145 = vmatmul.mubr.bf16.gmra.mxu0 %v1063
        %v1146 = vpop.f32.mrf.mxu0
        %v1147 = vadd.f32 0.0, %v1146
        %v1148 = vpop.f32.mrf.mxu0
        %v1149 = vpop.f32.mrf.mxu0
        %v1150 = vpop.f32.mrf.mxu0
        %1151 = vdwg.mxu0
        %v1168 = vunpack.c.l.b16 %v1029
        %v1169 = vunpack.c.l.b16 %v1030
        %v1170 = vunpack.c.l.b16 %v1031
        %v1171 = vunpack.c.l.b16 %v1032
        %v1172 = vunpack.c.l.b16 %v1033
        %v1173 = vunpack.c.l.b16 %v1034
        %v1174 = vunpack.c.l.b16 %v1035
        %v1175 = vunpack.c.l.b16 %v1036
        %v1176 = vunpack.c.l.b16 %v1037
        %v1177 = vunpack.c.l.b16 %v1038
        %v1178 = vunpack.c.l.b16 %v1039
        %v1179 = vunpack.c.l.b16 %v1040
        %v1180 = vunpack.c.l.b16 %v1041
        %v1181 = vunpack.c.l.b16 %v1042
        %v1182 = vunpack.c.l.b16 %v1043
        %v1183 = vunpack.c.l.b16 %v1044
        %v1184 = vpack.c.b16 %v1169, %v1168
        %v1185 = vpack.c.b16 %v1171, %v1170
        %v1186 = vpack.c.b16 %v1173, %v1172
        %v1187 = vpack.c.b16 %v1175, %v1174
        %v1188 = vpack.c.b16 %v1177, %v1176
        %v1189 = vpack.c.b16 %v1179, %v1178
        %v1190 = vpack.c.b16 %v1181, %v1180
        %v1191 = vpack.c.b16 %v1183, %v1182
        %1200 = vmatprep.subr.bf16.mxu0 0
        %1201 = vmatpush1.bf16.msra.mxu0 %v1191
        %1202 = vmatprep.subr.bf16.mxu0 0
        %1203 = vmatpush1.bf16.msra.mxu0 %v1190
        %1204 = vmatprep.subr.bf16.mxu0 0
        %1205 = vmatpush1.bf16.msra.mxu0 %v1189
        %1206 = vmatprep.subr.bf16.mxu0 0
        %1207 = vmatpush1.bf16.msra.mxu0 %v1188
        %1208 = vmatprep.subr.bf16.mxu0 0
        %1209 = vmatpush1.bf16.msra.mxu0 %v1187
        %1210 = vmatprep.subr.bf16.mxu0 0
        %1211 = vmatpush1.bf16.msra.mxu0 %v1186
        %1212 = vmatprep.subr.bf16.mxu0 0
        %1213 = vmatpush1.bf16.msra.mxu0 %v1185
        %1214 = vmatprep.subr.bf16.mxu0 0
        %1215 = vmatpush1.bf16.msra.mxu0 %v1184
        %1216 = vmatprep.subr.bf16.mxu0 0
        %1217 = vmatpush2.bf16.msra.mxu0 0
        %1218 = vmatprep.subr.bf16.mxu0 0
        %1219 = vmatpush2.bf16.msra.mxu0 0
        %1220 = vmatprep.subr.bf16.mxu0 0
        %1221 = vmatpush2.bf16.msra.mxu0 0
        %1222 = vmatprep.subr.bf16.mxu0 0
        %1223 = vmatpush2.bf16.msra.mxu0 0
        %1224 = vmatprep.subr.bf16.mxu0 0
        %1225 = vmatpush2.bf16.msra.mxu0 0
        %1226 = vmatprep.subr.bf16.mxu0 0
        %1227 = vmatpush2.bf16.msra.mxu0 0
        %1228 = vmatprep.subr.bf16.mxu0 0
        %1229 = vmatpush2.bf16.msra.mxu0 0
        %1230 = vmatprep.subr.bf16.mxu0 0
        %1231 = vmatpush2.bf16.msra.mxu0 0
        %1232 = vmatprep.mubr.bf16.mxu0 0
        %1233 = vmatmul.mubr.bf16.gmra.mxu0 %v1045
        %v1234 = vpop.f32.mrf.mxu0
        %v1235 = vadd.f32 %v1147, %v1234
        %v1236 = vpop.f32.mrf.mxu0
        %v1237 = vpop.f32.mrf.mxu0
        %v1238 = vpop.f32.mrf.mxu0
        %1239 = vdwg.mxu0
        %v1240 = vlaneseq
        %v1241 = vshrl.u32 %v1240, 7
        %v1242 = vsub.s32 0, %v1241
        %v1243 = vrot.slane %v360, %v1242
        %v1244 = vadd.f32 %v1235, %v1243
        %v1245 = vmax.f32 %v1244, 0.0
        %v1246 = vmul.f32 %v1245, %v920
        %s1247 = scalar_lea.vmem [#allocation8], 320
        %v1248 = vld [vmem:[%s1247] sm:$0xf]
        %v1249 = vld [vmem:[%s1247 + $0x4] sm:$0xf]
        %v1250 = vld [vmem:[%s1247 + $0x8] sm:$0xf]
        %v1251 = vld [vmem:[%s1247 + $0xc] sm:$0xf]
        %v1252 = vld [vmem:[%s1247 + $0x10] sm:$0xf]
        %v1253 = vld [vmem:[%s1247 + $0x14] sm:$0xf]
        %v1254 = vld [vmem:[%s1247 + $0x18] sm:$0xf]
        %v1255 = vld [vmem:[%s1247 + $0x1c] sm:$0xf]
        %v1256 = vld [vmem:[%s1247 + $0x20] sm:$0xf]
        %v1257 = vld [vmem:[%s1247 + $0x24] sm:$0xf]
        %v1258 = vld [vmem:[%s1247 + $0x28] sm:$0xf]
        %v1259 = vld [vmem:[%s1247 + $0x2c] sm:$0xf]
        %v1260 = vld [vmem:[%s1247 + $0x30] sm:$0xf]
        %v1261 = vld [vmem:[%s1247 + $0x34] sm:$0xf]
        %v1262 = vld [vmem:[%s1247 + $0x38] sm:$0xf]
        %v1263 = vld [vmem:[%s1247 + $0x3c] sm:$0xf]
        %v1264 = vpack.c.bf16 %v1246, %v1246
        %v1265 = vlaneseq
        %v1266 = vshrl.u32 %v1265, 7
        %v1267 = vsub.s32 0, %v1266
        %v1268 = vrot.slane %v361, %v1267
        %v1285 = vunpack.c.l.b16 %v1248
        %v1286 = vunpack.c.l.b16 %v1249
        %v1287 = vunpack.c.l.b16 %v1250
        %v1288 = vunpack.c.l.b16 %v1251
        %v1289 = vunpack.c.l.b16 %v1252
        %v1290 = vunpack.c.l.b16 %v1253
        %v1291 = vunpack.c.l.b16 %v1254
        %v1292 = vunpack.c.l.b16 %v1255
        %v1293 = vunpack.c.l.b16 %v1256
        %v1294 = vunpack.c.l.b16 %v1257
        %v1295 = vunpack.c.l.b16 %v1258
        %v1296 = vunpack.c.l.b16 %v1259
        %v1297 = vunpack.c.l.b16 %v1260
        %v1298 = vunpack.c.l.b16 %v1261
        %v1299 = vunpack.c.l.b16 %v1262
        %v1300 = vunpack.c.l.b16 %v1263
        %v1301 = vpack.c.b16 %v1286, %v1285
        %v1302 = vpack.c.b16 %v1288, %v1287
        %v1303 = vpack.c.b16 %v1290, %v1289
        %v1304 = vpack.c.b16 %v1292, %v1291
        %v1305 = vpack.c.b16 %v1294, %v1293
        %v1306 = vpack.c.b16 %v1296, %v1295
        %v1307 = vpack.c.b16 %v1298, %v1297
        %v1308 = vpack.c.b16 %v1300, %v1299
        %1317 = vmatprep.subr.bf16.mxu0 0
        %1318 = vmatpush1.bf16.msra.mxu0 %v1308
        %1319 = vmatprep.subr.bf16.mxu0 0
        %1320 = vmatpush1.bf16.msra.mxu0 %v1307
        %1321 = vmatprep.subr.bf16.mxu0 0
        %1322 = vmatpush1.bf16.msra.mxu0 %v1306
        %1323 = vmatprep.subr.bf16.mxu0 0
        %1324 = vmatpush1.bf16.msra.mxu0 %v1305
        %1325 = vmatprep.subr.bf16.mxu0 0
        %1326 = vmatpush1.bf16.msra.mxu0 %v1304
        %1327 = vmatprep.subr.bf16.mxu0 0
        %1328 = vmatpush1.bf16.msra.mxu0 %v1303
        %1329 = vmatprep.subr.bf16.mxu0 0
        %1330 = vmatpush1.bf16.msra.mxu0 %v1302
        %1331 = vmatprep.subr.bf16.mxu0 0
        %1332 = vmatpush1.bf16.msra.mxu0 %v1301
        %1333 = vmatprep.subr.bf16.mxu0 0
        %1334 = vmatpush2.bf16.msra.mxu0 0
        %1335 = vmatprep.subr.bf16.mxu0 0
        %1336 = vmatpush2.bf16.msra.mxu0 0
        %1337 = vmatprep.subr.bf16.mxu0 0
        %1338 = vmatpush2.bf16.msra.mxu0 0
        %1339 = vmatprep.subr.bf16.mxu0 0
        %1340 = vmatpush2.bf16.msra.mxu0 0
        %1341 = vmatprep.subr.bf16.mxu0 0
        %1342 = vmatpush2.bf16.msra.mxu0 0
        %1343 = vmatprep.subr.bf16.mxu0 0
        %1344 = vmatpush2.bf16.msra.mxu0 0
        %1345 = vmatprep.subr.bf16.mxu0 0
        %1346 = vmatpush2.bf16.msra.mxu0 0
        %1347 = vmatprep.subr.bf16.mxu0 0
        %1348 = vmatpush2.bf16.msra.mxu0 0
        %1349 = vmatprep.mubr.bf16.mxu0 0
        %1350 = vmatmul.mubr.bf16.gmra.mxu0 %v1264
        %v1351 = vpop.f32.mrf.mxu0
        %v1352 = vadd.f32 %v1268, %v1351
        %v1353 = vpop.f32.mrf.mxu0
        %v1354 = vpop.f32.mrf.mxu0
        %v1355 = vpop.f32.mrf.mxu0
        %1356 = vdwg.mxu0
        %1357 = vst [vmem:[%s345] sm:$0xff] %v1352
        %s1358 = sand.u32 %s24, 1
        %s1359 = scalar_lea.sflag [#allocation5], %s1358
        %s1360 = sand.u32 %s210, 1
        %s1361 = smul.addr %s1360, 8
        %s1362 = scalar_lea.vmem [#allocation12], %s1361
        // Predicated region
        $region61: #{tpu_custom_call.1} parent=43 // pred_check
          %p1363 = pneg %p173
        $region62: #{tpu_custom_call.1} parent=43 // pred_check_branch
          %1365 = sbr.rel (%p1363) target = $region64
        $region63: #{tpu_custom_call.1} parent=43 // pred_region
          %s1367 = ssub.s32 128, 128
          %1368 = vsyncadd [#allocation5], %s1367
          %s1370 = sshll.u32 [#allocation9], 4
          %s1371 = int_to_ptr.vmem [resolvable:$true] %s1370
          %1373 = dma.vmem_to_hbm [thread:$0]  %s1371, 128, %s6, [#allocation5]
        $region64: #{tpu_custom_call.1} parent=43 // pred_fallthru
          _
        // Predicated region
        $region65: #{tpu_custom_call.1} parent=43 // pred_check
          %p1374 = pneg %p194
        $region66: #{tpu_custom_call.1} parent=43 // pred_check_branch
          %1376 = sbr.rel (%p1374) target = $region68
        $region67: #{tpu_custom_call.1} parent=43 // pred_region
          %s1378 = ssub.s32 128, 128
          %1379 = vsyncadd [#allocation11], %s1378
          %s1381 = sshll.u32 [#allocation10], 4
          %s1382 = int_to_ptr.vmem [resolvable:$true] %s1381
          %1384 = dma.vmem_to_hbm [thread:$0]  %s1382, 128, %s7, [#allocation11]
        $region68: #{tpu_custom_call.1} parent=43 // pred_fallthru
          _
        // Predicated region
        $region69: #{tpu_custom_call.1} parent=43 // pred_check
          %p1385 = pneg %p220
        $region70: #{tpu_custom_call.1} parent=43 // pred_check_branch
          %1387 = sbr.rel (%p1385) target = $region72
        $region71: #{tpu_custom_call.1} parent=43 // pred_region
          %s1389 = ssub.s32 128, 128
          %1390 = vsyncadd %s1359, %s1389
          %s1391 = smul.addr %s24, 128
          %s1392 = scalar_lea.hbm %s8, %s1391
          %s1394 = sshll.u32 %s1362, 4
          %s1395 = int_to_ptr.vmem [resolvable:$true] %s1394
          %1397 = dma.vmem_to_hbm [thread:$0]  %s1395, 128, %s1392, %s1359
        $region72: #{tpu_custom_call.1} parent=43 // pred_fallthru
          _
        // Predicated region
        $region73: #{tpu_custom_call.1} parent=43 // pred_check
          %p1398 = pneg %p173
        $region74: #{tpu_custom_call.1} parent=43 // pred_check_branch
          %1400 = sbr.rel (%p1398) target = $region76
        $region75: #{tpu_custom_call.1} parent=43 // pred_region
          %1401 = dma.done [#allocation5], 128
        $region76: #{tpu_custom_call.1} parent=43 // pred_fallthru
          _
        // Predicated region
        $region77: #{tpu_custom_call.1} parent=43 // pred_check
          %p1402 = pneg %p194
        $region78: #{tpu_custom_call.1} parent=43 // pred_check_branch
          %1404 = sbr.rel (%p1402) target = $region80
        $region79: #{tpu_custom_call.1} parent=43 // pred_region
          %1405 = dma.done [#allocation11], 128
        $region80: #{tpu_custom_call.1} parent=43 // pred_fallthru
          _
      $region44: #{tpu_custom_call.1} parent=5 // pred_fallthru
        _
      %p1406 = scmp.le.s32.totalorder 2, %s19
      // Predicated region
      $region81: #{tpu_custom_call.1} parent=5 // pred_check
        %p1407 = pneg %p1406
      $region82: #{tpu_custom_call.1} parent=5 // pred_check_branch
        %1409 = sbr.rel (%p1407) target = $region84
      $region83: #{tpu_custom_call.1} parent=5 // pred_region
        %s1410 = ssub.s32 %s19, 2
        // Predicated region
        $region85: #{tpu_custom_call.1} parent=83 // pred_check
          %p1411 = pneg %p226
        $region86: #{tpu_custom_call.1} parent=83 // pred_check_branch
          %1413 = sbr.rel (%p1411) target = $region88
        $region87: #{tpu_custom_call.1} parent=83 // pred_region
          %s1414 = sand.u32 %s25, 1
          %s1415 = scalar_lea.sflag [#allocation5], %s1414
          %s1416 = sand.u32 %s211, 1
          %s1417 = smul.addr %s1416, 8
          %s1418 = scalar_lea.vmem [#allocation12], %s1417
          %1419 = dma.done %s1415, 128
        $region88: #{tpu_custom_call.1} parent=83 // pred_fallthru
          _
      $region84: #{tpu_custom_call.1} parent=5 // pred_fallthru
        _
    $region6: #{tpu_custom_call.1} parent=1 // loop_footer
      %s23 = sadd.s32 1, %s19
    $region7: #{tpu_custom_call.1} parent=1 // loop_footer_branch
      %18 = sbr.rel target = $region3
    $region8: #{tpu_custom_call.1} parent=1 // loop_exit
      _
    %1420 = vsyncpa [#allocation4], 1
    %s1421 = scalar_lea.sflag [#allocation4], 1
    %1422 = vsyncpa %s1421, 1
    %1423 = vsyncpa [#allocation7], 1
    %1424 = vsyncpa [#allocation5], 1
    %s1425 = scalar_lea.sflag [#allocation5], 1
    %1426 = vsyncpa %s1425, 1
    %1427 = vsyncpa [#allocation11], 1

</llo_original>
